<compile_context>
chip_gen: v5e
topology: v5e:2x2
jax: 0.10.0
libtpu: 0.0.40
codegen_flags: <defaults>
</compile_context>

<pallas_src>
import functools

import jax
import jax.numpy as jnp
import numpy as np
from jax import lax
from jax.experimental import pallas as pl
from jax.experimental.pallas import tpu as pltpu


def lstm_kernel(x_ref, h0_ref, c0_ref, wih_ref, whh_ref, bias_ref,
                wfc_ref, bfc_ref, out_ref, *, seq_len, use_highest_precision):
    """Single-invocation LSTM recurrence + final Linear.

    x_ref    : (T*B, D)  time-major-flattened input (matmul dtype)
    h0/c0    : (B, H)    f32 initial states
    wih_ref  : (D, 4H)   W_ih^T (matmul dtype)
    whh_ref  : (H, 4H)   W_hh^T (matmul dtype)
    bias_ref : (1, 4H)   b_ih + b_hh, f32
    wfc_ref  : (H, C)    W_fc^T (matmul dtype)
    bfc_ref  : (1, C)    f32
    out_ref  : (B, C)    f32
    Gate order follows PyTorch: [i, f, g, o].
    """
    B, H = h0_ref.shape
    mm_dtype = whh_ref.dtype
    prec = lax.Precision.HIGHEST if use_highest_precision else None

    # Hoisted input projection: one big matmul outside the serial recurrence,
    # with the (broadcast) bias folded in once.
    gx = (jnp.dot(x_ref[...], wih_ref[...],
                  preferred_element_type=jnp.float32, precision=prec)
          + bias_ref[...])                                     # (T*B, 4H) f32

    # Loop-invariant loads / precompute.
    whh = whh_ref[...]                                         # (H, 4H)
    h = h0_ref[...].astype(mm_dtype)                           # (B, H) matmul dtype
    c = c0_ref[...]                                            # (B, H) f32

    # g-gate lane mask on the 4H axis (lanes [2H, 3H) take tanh, rest sigmoid).
    lane = lax.broadcasted_iota(jnp.int32, (B, 4 * H), 1)
    is_g = jnp.logical_and(lane >= 2 * H, lane < 3 * H)

    # Fully unrolled recurrence (seq_len is small & static): only the h-path
    # matmul and the gate elementwise math remain on the serial critical path.
    for t in range(seq_len):
        gates = gx[t * B:(t + 1) * B, :] + jnp.dot(
            h, whh, preferred_element_type=jnp.float32, precision=prec)
        # Two full-vreg EUP passes over the whole (B, 4H) tile, then select the
        # g-gate lanes — a 32-lane slice costs the same EUP pass as the full
        # vreg, so this is 2 passes instead of 4.
        sg = jax.nn.sigmoid(gates)
        tg = jnp.tanh(gates)
        act = jnp.where(is_g, tg, sg)
        i_g = act[:, 0 * H:1 * H]
        f_g = act[:, 1 * H:2 * H]
        g_g = act[:, 2 * H:3 * H]
        o_g = act[:, 3 * H:4 * H]
        c = f_g * c + i_g * g_g                                # f32 state math
        # Produce h directly in the matmul dtype (it only feeds matmuls).
        h = (o_g * jnp.tanh(c)).astype(mm_dtype)

    # Final fc on the last timestep's hidden state (h already in matmul dtype).
    out_ref[...] = (jnp.dot(h, wfc_ref[...],
                            preferred_element_type=jnp.float32, precision=prec)
                    + bfc_ref[...]).astype(out_ref.dtype)


def prepare_lstm_params(w_ih, w_hh, b_ih, b_hh, w_fc, b_fc,
                        matmul_dtype=jnp.bfloat16):
    """One-time weight prep — keep these small XLA ops OUT of the per-call path."""
    H4 = w_ih.shape[0]
    wih = jnp.asarray(w_ih).T.astype(matmul_dtype)                       # (D, 4H)
    whh = jnp.asarray(w_hh).T.astype(matmul_dtype)                       # (H, 4H)
    bias = (jnp.asarray(b_ih) + jnp.asarray(b_hh)).reshape(1, H4).astype(jnp.float32)
    wfc = jnp.asarray(w_fc).T.astype(matmul_dtype)                       # (H, C)
    bfc = jnp.asarray(b_fc).reshape(1, -1).astype(jnp.float32)           # (1, C)
    return wih, whh, bias, wfc, bfc


@jax.jit
def simple_lstm_forward(x, h0, c0, wih, whh, bias, wfc, bfc):
    """Per-call path: only the x relayout + the pallas_call.

    x: (B, T, D);  h0/c0: (B, H)  (PyTorch's (num_layers=1, B, H) squeezed).
    Prepared params come from prepare_lstm_params().
    """
    assert h0.ndim == 2 and c0.ndim == 2, (
        "h0/c0 must be (B, H) — squeeze PyTorch's num_layers dim (num_layers=1).")
    B, T, D = x.shape
    H = h0.shape[-1]
    C = wfc.shape[-1]
    mm_dtype = wih.dtype
    use_highest = (mm_dtype == jnp.float32)

    # Time-major flatten so each timestep is a contiguous static row-slice in
    # the kernel.  TODO(synk): at scale, drop this transpose and grid over T
    # with a (B, 1, D) BlockSpec on the natural layout instead.
    x2d = jnp.transpose(x, (1, 0, 2)).reshape(T * B, D).astype(mm_dtype)

    def vmem():
        return pl.BlockSpec(memory_space=pltpu.MemorySpace.VMEM)

    return pl.pallas_call(
        functools.partial(lstm_kernel, seq_len=T,
                          use_highest_precision=use_highest),
        out_shape=jax.ShapeDtypeStruct((B, C), jnp.float32),
        in_specs=[vmem() for _ in range(8)],
        out_specs=vmem(),
    )(x2d, h0.astype(jnp.float32), c0.astype(jnp.float32),
      wih, whh, bias, wfc, bfc)


def lstm_reference(x, h0, c0, w_ih, w_hh, b_ih, b_hh, w_fc, b_fc):
    """Pure-JAX f32 reference matching torch.nn.LSTM (batch_first) + Linear."""
    H = h0.shape[1]

    def step(carry, x_t):
        h, c = carry
        gates = x_t @ w_ih.T + h @ w_hh.T + b_ih + b_hh
        i = jax.nn.sigmoid(gates[:, 0 * H:1 * H])
        f = jax.nn.sigmoid(gates[:, 1 * H:2 * H])
        g = jnp.tanh(gates[:, 2 * H:3 * H])
        o = jax.nn.sigmoid(gates[:, 3 * H:4 * H])
        c_new = f * c + i * g
        h_new = o * jnp.tanh(c_new)
        return (h_new, c_new), h_new

    (h_T, _), _ = lax.scan(step, (h0, c0), jnp.transpose(x, (1, 0, 2)))
    return h_T @ w_fc.T + b_fc


if __name__ == "__main__":
    # Small shapes consistent with the module's forward.
    B, T, D, H, C = 2, 8, 16, 32, 8

    key = jax.random.PRNGKey(0)
    kx, kh, kc, k1, k2, k3, k4, k5, k6 = jax.random.split(key, 9)

    x = jax.random.normal(kx, (B, T, D), dtype=jnp.float32)

    # torch.rand -> Uniform[0,1) initial states (deterministic here;
    # PyTorch shape (num_layers=1, B, H) with the layer dim squeezed).
    h0 = jax.random.uniform(kh, (B, H), dtype=jnp.float32)
    c0 = jax.random.uniform(kc, (B, H), dtype=jnp.float32)

    # Deterministic parameter init mimicking PyTorch U(-1/sqrt(H), 1/sqrt(H)).
    bound = 1.0 / np.sqrt(H)
    w_ih = jax.random.uniform(k1, (4 * H, D), minval=-bound, maxval=bound)
    w_hh = jax.random.uniform(k2, (4 * H, H), minval=-bound, maxval=bound)
    b_ih = jax.random.uniform(k3, (4 * H,), minval=-bound, maxval=bound)
    b_hh = jax.random.uniform(k4, (4 * H,), minval=-bound, maxval=bound)
    w_fc = jax.random.uniform(k5, (C, H), minval=-bound, maxval=bound)
    b_fc = jax.random.uniform(k6, (C,), minval=-bound, maxval=bound)

    ref = lstm_reference(x, h0, c0, w_ih, w_hh, b_ih, b_hh, w_fc, b_fc)

    # Exact-semantics check: f32 matmul operands + precision=HIGHEST dots.
    params_f32 = prepare_lstm_params(w_ih, w_hh, b_ih, b_hh, w_fc, b_fc,
                                     matmul_dtype=jnp.float32)
    out_f32 = jax.block_until_ready(
        simple_lstm_forward(x, h0, c0, *params_f32))
    np.testing.assert_allclose(np.asarray(out_f32), np.asarray(ref),
                               rtol=1e-5, atol=1e-5)

    # Perf default: bf16 matmul operands (MXU-native), f32 state/accumulation.
    params_bf16 = prepare_lstm_params(w_ih, w_hh, b_ih, b_hh, w_fc, b_fc,
                                      matmul_dtype=jnp.bfloat16)
    out_bf16 = jax.block_until_ready(
        simple_lstm_forward(x, h0, c0, *params_bf16))
    np.testing.assert_allclose(np.asarray(out_bf16), np.asarray(ref),
                               rtol=5e-2, atol=5e-2)

    print("KERNEL_OK")
</pallas_src>

<mosaic_0001>
module attributes {stable_mosaic.version = 11 : i64} {
  func.func @lstm_kernel(%arg0: memref<16x16xf32, #tpu.memory_space<vmem>>, %arg1: memref<2x32xf32, #tpu.memory_space<vmem>>, %arg2: memref<2x32xf32, #tpu.memory_space<vmem>>, %arg3: memref<16x128xf32, #tpu.memory_space<vmem>>, %arg4: memref<32x128xf32, #tpu.memory_space<vmem>>, %arg5: memref<1x128xf32, #tpu.memory_space<vmem>>, %arg6: memref<32x8xf32, #tpu.memory_space<vmem>>, %arg7: memref<1x8xf32, #tpu.memory_space<vmem>>, %arg8: memref<2x8xf32, #tpu.memory_space<vmem>>) attributes {dimension_semantics = [], scalar_prefetch = 0 : i64, scratch_operands = 0 : i64, tpu.core_type = #tpu.core_type<tc>} {
    %c0 = arith.constant 0 : index
    %c0_0 = arith.constant 0 : index
    %0 = vector.load %arg0[%c0, %c0_0] : memref<16x16xf32, #tpu.memory_space<vmem>>, vector<16x16xf32>
    %c0_1 = arith.constant 0 : index
    %c0_2 = arith.constant 0 : index
    %1 = vector.load %arg3[%c0_1, %c0_2] : memref<16x128xf32, #tpu.memory_space<vmem>>, vector<16x128xf32>
    %cst = arith.constant dense<0.000000e+00> : vector<16x128xf32>
    %2 = tpu.matmul %0, %1, %cst {dimension_numbers = #tpu.dot_dimension_numbers<[1], [0], [0], [1], [0, 0, 1, 1], [], []>, precision = #tpu.contract_precision<fp32>} : vector<16x16xf32>, vector<16x128xf32>, vector<16x128xf32> -> vector<16x128xf32>
    %c0_3 = arith.constant 0 : index
    %c0_4 = arith.constant 0 : index
    %3 = vector.load %arg5[%c0_3, %c0_4] : memref<1x128xf32, #tpu.memory_space<vmem>>, vector<1x128xf32>
    %4 = vector.broadcast %3 : vector<1x128xf32> to vector<16x128xf32>
    %5 = arith.addf %2, %4 : vector<16x128xf32>
    %c0_5 = arith.constant 0 : index
    %c0_6 = arith.constant 0 : index
    %6 = vector.load %arg4[%c0_5, %c0_6] : memref<32x128xf32, #tpu.memory_space<vmem>>, vector<32x128xf32>
    %c0_7 = arith.constant 0 : index
    %c0_8 = arith.constant 0 : index
    %7 = vector.load %arg1[%c0_7, %c0_8] : memref<2x32xf32, #tpu.memory_space<vmem>>, vector<2x32xf32>
    %c0_9 = arith.constant 0 : index
    %c0_10 = arith.constant 0 : index
    %8 = vector.load %arg2[%c0_9, %c0_10] : memref<2x32xf32, #tpu.memory_space<vmem>>, vector<2x32xf32>
    %9 = tpu.iota {dimensions = array<i32: 1>} : vector<2x128xi32>
    %c64_i32 = arith.constant 64 : i32
    %10 = vector.broadcast %c64_i32 : i32 to vector<2x128xi32>
    %11 = arith.cmpi sge, %9, %10 : vector<2x128xi32>
    %c96_i32 = arith.constant 96 : i32
    %12 = vector.broadcast %c96_i32 : i32 to vector<2x128xi32>
    %13 = arith.cmpi slt, %9, %12 : vector<2x128xi32>
    %14 = arith.andi %11, %13 : vector<2x128xi1>
    %15 = vector.extract_strided_slice %5 {offsets = [0, 0], sizes = [2, 128], strides = [1, 1]} : vector<16x128xf32> to vector<2x128xf32>
    %cst_11 = arith.constant dense<0.000000e+00> : vector<2x128xf32>
    %16 = tpu.matmul %7, %6, %cst_11 {dimension_numbers = #tpu.dot_dimension_numbers<[1], [0], [0], [1], [0, 0, 1, 1], [], []>, precision = #tpu.contract_precision<fp32>} : vector<2x32xf32>, vector<32x128xf32>, vector<2x128xf32> -> vector<2x128xf32>
    %17 = arith.addf %15, %16 : vector<2x128xf32>
    %18 = arith.negf %17 : vector<2x128xf32>
    %19 = math.exp %18 : vector<2x128xf32>
    %cst_12 = arith.constant 1.000000e+00 : f32
    %20 = vector.broadcast %cst_12 : f32 to vector<2x128xf32>
    %21 = arith.addf %20, %19 : vector<2x128xf32>
    %22 = arith.divf %20, %21 : vector<2x128xf32>
    %23 = math.tanh %17 : vector<2x128xf32>
    %24 = arith.select %14, %23, %22 : vector<2x128xi1>, vector<2x128xf32>
    %25 = vector.extract_strided_slice %24 {offsets = [0, 0], sizes = [2, 32], strides = [1, 1]} : vector<2x128xf32> to vector<2x32xf32>
    %26 = vector.extract_strided_slice %24 {offsets = [0, 32], sizes = [2, 32], strides = [1, 1]} : vector<2x128xf32> to vector<2x32xf32>
    %27 = vector.extract_strided_slice %24 {offsets = [0, 64], sizes = [2, 32], strides = [1, 1]} : vector<2x128xf32> to vector<2x32xf32>
    %28 = vector.extract_strided_slice %24 {offsets = [0, 96], sizes = [2, 32], strides = [1, 1]} : vector<2x128xf32> to vector<2x32xf32>
    %29 = arith.mulf %26, %8 : vector<2x32xf32>
    %30 = arith.mulf %25, %27 : vector<2x32xf32>
    %31 = arith.addf %29, %30 : vector<2x32xf32>
    %32 = math.tanh %31 : vector<2x32xf32>
    %33 = arith.mulf %28, %32 : vector<2x32xf32>
    %34 = vector.extract_strided_slice %5 {offsets = [2, 0], sizes = [2, 128], strides = [1, 1]} : vector<16x128xf32> to vector<2x128xf32>
    %cst_13 = arith.constant dense<0.000000e+00> : vector<2x128xf32>
    %35 = tpu.matmul %33, %6, %cst_13 {dimension_numbers = #tpu.dot_dimension_numbers<[1], [0], [0], [1], [0, 0, 1, 1], [], []>, precision = #tpu.contract_precision<fp32>} : vector<2x32xf32>, vector<32x128xf32>, vector<2x128xf32> -> vector<2x128xf32>
    %36 = arith.addf %34, %35 : vector<2x128xf32>
    %37 = arith.negf %36 : vector<2x128xf32>
    %38 = math.exp %37 : vector<2x128xf32>
    %cst_14 = arith.constant 1.000000e+00 : f32
    %39 = vector.broadcast %cst_14 : f32 to vector<2x128xf32>
    %40 = arith.addf %39, %38 : vector<2x128xf32>
    %41 = arith.divf %39, %40 : vector<2x128xf32>
    %42 = math.tanh %36 : vector<2x128xf32>
    %43 = arith.select %14, %42, %41 : vector<2x128xi1>, vector<2x128xf32>
    %44 = vector.extract_strided_slice %43 {offsets = [0, 0], sizes = [2, 32], strides = [1, 1]} : vector<2x128xf32> to vector<2x32xf32>
    %45 = vector.extract_strided_slice %43 {offsets = [0, 32], sizes = [2, 32], strides = [1, 1]} : vector<2x128xf32> to vector<2x32xf32>
    %46 = vector.extract_strided_slice %43 {offsets = [0, 64], sizes = [2, 32], strides = [1, 1]} : vector<2x128xf32> to vector<2x32xf32>
    %47 = vector.extract_strided_slice %43 {offsets = [0, 96], sizes = [2, 32], strides = [1, 1]} : vector<2x128xf32> to vector<2x32xf32>
    %48 = arith.mulf %45, %31 : vector<2x32xf32>
    %49 = arith.mulf %44, %46 : vector<2x32xf32>
    %50 = arith.addf %48, %49 : vector<2x32xf32>
    %51 = math.tanh %50 : vector<2x32xf32>
    %52 = arith.mulf %47, %51 : vector<2x32xf32>
    %53 = vector.extract_strided_slice %5 {offsets = [4, 0], sizes = [2, 128], strides = [1, 1]} : vector<16x128xf32> to vector<2x128xf32>
    %cst_15 = arith.constant dense<0.000000e+00> : vector<2x128xf32>
    %54 = tpu.matmul %52, %6, %cst_15 {dimension_numbers = #tpu.dot_dimension_numbers<[1], [0], [0], [1], [0, 0, 1, 1], [], []>, precision = #tpu.contract_precision<fp32>} : vector<2x32xf32>, vector<32x128xf32>, vector<2x128xf32> -> vector<2x128xf32>
    %55 = arith.addf %53, %54 : vector<2x128xf32>
    %56 = arith.negf %55 : vector<2x128xf32>
    %57 = math.exp %56 : vector<2x128xf32>
    %cst_16 = arith.constant 1.000000e+00 : f32
    %58 = vector.broadcast %cst_16 : f32 to vector<2x128xf32>
    %59 = arith.addf %58, %57 : vector<2x128xf32>
    %60 = arith.divf %58, %59 : vector<2x128xf32>
    %61 = math.tanh %55 : vector<2x128xf32>
    %62 = arith.select %14, %61, %60 : vector<2x128xi1>, vector<2x128xf32>
    %63 = vector.extract_strided_slice %62 {offsets = [0, 0], sizes = [2, 32], strides = [1, 1]} : vector<2x128xf32> to vector<2x32xf32>
    %64 = vector.extract_strided_slice %62 {offsets = [0, 32], sizes = [2, 32], strides = [1, 1]} : vector<2x128xf32> to vector<2x32xf32>
    %65 = vector.extract_strided_slice %62 {offsets = [0, 64], sizes = [2, 32], strides = [1, 1]} : vector<2x128xf32> to vector<2x32xf32>
    %66 = vector.extract_strided_slice %62 {offsets = [0, 96], sizes = [2, 32], strides = [1, 1]} : vector<2x128xf32> to vector<2x32xf32>
    %67 = arith.mulf %64, %50 : vector<2x32xf32>
    %68 = arith.mulf %63, %65 : vector<2x32xf32>
    %69 = arith.addf %67, %68 : vector<2x32xf32>
    %70 = math.tanh %69 : vector<2x32xf32>
    %71 = arith.mulf %66, %70 : vector<2x32xf32>
    %72 = vector.extract_strided_slice %5 {offsets = [6, 0], sizes = [2, 128], strides = [1, 1]} : vector<16x128xf32> to vector<2x128xf32>
    %cst_17 = arith.constant dense<0.000000e+00> : vector<2x128xf32>
    %73 = tpu.matmul %71, %6, %cst_17 {dimension_numbers = #tpu.dot_dimension_numbers<[1], [0], [0], [1], [0, 0, 1, 1], [], []>, precision = #tpu.contract_precision<fp32>} : vector<2x32xf32>, vector<32x128xf32>, vector<2x128xf32> -> vector<2x128xf32>
    %74 = arith.addf %72, %73 : vector<2x128xf32>
    %75 = arith.negf %74 : vector<2x128xf32>
    %76 = math.exp %75 : vector<2x128xf32>
    %cst_18 = arith.constant 1.000000e+00 : f32
    %77 = vector.broadcast %cst_18 : f32 to vector<2x128xf32>
    %78 = arith.addf %77, %76 : vector<2x128xf32>
    %79 = arith.divf %77, %78 : vector<2x128xf32>
    %80 = math.tanh %74 : vector<2x128xf32>
    %81 = arith.select %14, %80, %79 : vector<2x128xi1>, vector<2x128xf32>
    %82 = vector.extract_strided_slice %81 {offsets = [0, 0], sizes = [2, 32], strides = [1, 1]} : vector<2x128xf32> to vector<2x32xf32>
    %83 = vector.extract_strided_slice %81 {offsets = [0, 32], sizes = [2, 32], strides = [1, 1]} : vector<2x128xf32> to vector<2x32xf32>
    %84 = vector.extract_strided_slice %81 {offsets = [0, 64], sizes = [2, 32], strides = [1, 1]} : vector<2x128xf32> to vector<2x32xf32>
    %85 = vector.extract_strided_slice %81 {offsets = [0, 96], sizes = [2, 32], strides = [1, 1]} : vector<2x128xf32> to vector<2x32xf32>
    %86 = arith.mulf %83, %69 : vector<2x32xf32>
    %87 = arith.mulf %82, %84 : vector<2x32xf32>
    %88 = arith.addf %86, %87 : vector<2x32xf32>
    %89 = math.tanh %88 : vector<2x32xf32>
    %90 = arith.mulf %85, %89 : vector<2x32xf32>
    %91 = vector.extract_strided_slice %5 {offsets = [8, 0], sizes = [2, 128], strides = [1, 1]} : vector<16x128xf32> to vector<2x128xf32>
    %cst_19 = arith.constant dense<0.000000e+00> : vector<2x128xf32>
    %92 = tpu.matmul %90, %6, %cst_19 {dimension_numbers = #tpu.dot_dimension_numbers<[1], [0], [0], [1], [0, 0, 1, 1], [], []>, precision = #tpu.contract_precision<fp32>} : vector<2x32xf32>, vector<32x128xf32>, vector<2x128xf32> -> vector<2x128xf32>
    %93 = arith.addf %91, %92 : vector<2x128xf32>
    %94 = arith.negf %93 : vector<2x128xf32>
    %95 = math.exp %94 : vector<2x128xf32>
    %cst_20 = arith.constant 1.000000e+00 : f32
    %96 = vector.broadcast %cst_20 : f32 to vector<2x128xf32>
    %97 = arith.addf %96, %95 : vector<2x128xf32>
    %98 = arith.divf %96, %97 : vector<2x128xf32>
    %99 = math.tanh %93 : vector<2x128xf32>
    %100 = arith.select %14, %99, %98 : vector<2x128xi1>, vector<2x128xf32>
    %101 = vector.extract_strided_slice %100 {offsets = [0, 0], sizes = [2, 32], strides = [1, 1]} : vector<2x128xf32> to vector<2x32xf32>
    %102 = vector.extract_strided_slice %100 {offsets = [0, 32], sizes = [2, 32], strides = [1, 1]} : vector<2x128xf32> to vector<2x32xf32>
    %103 = vector.extract_strided_slice %100 {offsets = [0, 64], sizes = [2, 32], strides = [1, 1]} : vector<2x128xf32> to vector<2x32xf32>
    %104 = vector.extract_strided_slice %100 {offsets = [0, 96], sizes = [2, 32], strides = [1, 1]} : vector<2x128xf32> to vector<2x32xf32>
    %105 = arith.mulf %102, %88 : vector<2x32xf32>
    %106 = arith.mulf %101, %103 : vector<2x32xf32>
    %107 = arith.addf %105, %106 : vector<2x32xf32>
    %108 = math.tanh %107 : vector<2x32xf32>
    %109 = arith.mulf %104, %108 : vector<2x32xf32>
    %110 = vector.extract_strided_slice %5 {offsets = [10, 0], sizes = [2, 128], strides = [1, 1]} : vector<16x128xf32> to vector<2x128xf32>
    %cst_21 = arith.constant dense<0.000000e+00> : vector<2x128xf32>
    %111 = tpu.matmul %109, %6, %cst_21 {dimension_numbers = #tpu.dot_dimension_numbers<[1], [0], [0], [1], [0, 0, 1, 1], [], []>, precision = #tpu.contract_precision<fp32>} : vector<2x32xf32>, vector<32x128xf32>, vector<2x128xf32> -> vector<2x128xf32>
    %112 = arith.addf %110, %111 : vector<2x128xf32>
    %113 = arith.negf %112 : vector<2x128xf32>
    %114 = math.exp %113 : vector<2x128xf32>
    %cst_22 = arith.constant 1.000000e+00 : f32
    %115 = vector.broadcast %cst_22 : f32 to vector<2x128xf32>
    %116 = arith.addf %115, %114 : vector<2x128xf32>
    %117 = arith.divf %115, %116 : vector<2x128xf32>
    %118 = math.tanh %112 : vector<2x128xf32>
    %119 = arith.select %14, %118, %117 : vector<2x128xi1>, vector<2x128xf32>
    %120 = vector.extract_strided_slice %119 {offsets = [0, 0], sizes = [2, 32], strides = [1, 1]} : vector<2x128xf32> to vector<2x32xf32>
    %121 = vector.extract_strided_slice %119 {offsets = [0, 32], sizes = [2, 32], strides = [1, 1]} : vector<2x128xf32> to vector<2x32xf32>
    %122 = vector.extract_strided_slice %119 {offsets = [0, 64], sizes = [2, 32], strides = [1, 1]} : vector<2x128xf32> to vector<2x32xf32>
    %123 = vector.extract_strided_slice %119 {offsets = [0, 96], sizes = [2, 32], strides = [1, 1]} : vector<2x128xf32> to vector<2x32xf32>
    %124 = arith.mulf %121, %107 : vector<2x32xf32>
    %125 = arith.mulf %120, %122 : vector<2x32xf32>
    %126 = arith.addf %124, %125 : vector<2x32xf32>
    %127 = math.tanh %126 : vector<2x32xf32>
    %128 = arith.mulf %123, %127 : vector<2x32xf32>
    %129 = vector.extract_strided_slice %5 {offsets = [12, 0], sizes = [2, 128], strides = [1, 1]} : vector<16x128xf32> to vector<2x128xf32>
    %cst_23 = arith.constant dense<0.000000e+00> : vector<2x128xf32>
    %130 = tpu.matmul %128, %6, %cst_23 {dimension_numbers = #tpu.dot_dimension_numbers<[1], [0], [0], [1], [0, 0, 1, 1], [], []>, precision = #tpu.contract_precision<fp32>} : vector<2x32xf32>, vector<32x128xf32>, vector<2x128xf32> -> vector<2x128xf32>
    %131 = arith.addf %129, %130 : vector<2x128xf32>
    %132 = arith.negf %131 : vector<2x128xf32>
    %133 = math.exp %132 : vector<2x128xf32>
    %cst_24 = arith.constant 1.000000e+00 : f32
    %134 = vector.broadcast %cst_24 : f32 to vector<2x128xf32>
    %135 = arith.addf %134, %133 : vector<2x128xf32>
    %136 = arith.divf %134, %135 : vector<2x128xf32>
    %137 = math.tanh %131 : vector<2x128xf32>
    %138 = arith.select %14, %137, %136 : vector<2x128xi1>, vector<2x128xf32>
    %139 = vector.extract_strided_slice %138 {offsets = [0, 0], sizes = [2, 32], strides = [1, 1]} : vector<2x128xf32> to vector<2x32xf32>
    %140 = vector.extract_strided_slice %138 {offsets = [0, 32], sizes = [2, 32], strides = [1, 1]} : vector<2x128xf32> to vector<2x32xf32>
    %141 = vector.extract_strided_slice %138 {offsets = [0, 64], sizes = [2, 32], strides = [1, 1]} : vector<2x128xf32> to vector<2x32xf32>
    %142 = vector.extract_strided_slice %138 {offsets = [0, 96], sizes = [2, 32], strides = [1, 1]} : vector<2x128xf32> to vector<2x32xf32>
    %143 = arith.mulf %140, %126 : vector<2x32xf32>
    %144 = arith.mulf %139, %141 : vector<2x32xf32>
    %145 = arith.addf %143, %144 : vector<2x32xf32>
    %146 = math.tanh %145 : vector<2x32xf32>
    %147 = arith.mulf %142, %146 : vector<2x32xf32>
    %148 = vector.extract_strided_slice %5 {offsets = [14, 0], sizes = [2, 128], strides = [1, 1]} : vector<16x128xf32> to vector<2x128xf32>
    %cst_25 = arith.constant dense<0.000000e+00> : vector<2x128xf32>
    %149 = tpu.matmul %147, %6, %cst_25 {dimension_numbers = #tpu.dot_dimension_numbers<[1], [0], [0], [1], [0, 0, 1, 1], [], []>, precision = #tpu.contract_precision<fp32>} : vector<2x32xf32>, vector<32x128xf32>, vector<2x128xf32> -> vector<2x128xf32>
    %150 = arith.addf %148, %149 : vector<2x128xf32>
    %151 = arith.negf %150 : vector<2x128xf32>
    %152 = math.exp %151 : vector<2x128xf32>
    %cst_26 = arith.constant 1.000000e+00 : f32
    %153 = vector.broadcast %cst_26 : f32 to vector<2x128xf32>
    %154 = arith.addf %153, %152 : vector<2x128xf32>
    %155 = arith.divf %153, %154 : vector<2x128xf32>
    %156 = math.tanh %150 : vector<2x128xf32>
    %157 = arith.select %14, %156, %155 : vector<2x128xi1>, vector<2x128xf32>
    %158 = vector.extract_strided_slice %157 {offsets = [0, 0], sizes = [2, 32], strides = [1, 1]} : vector<2x128xf32> to vector<2x32xf32>
    %159 = vector.extract_strided_slice %157 {offsets = [0, 32], sizes = [2, 32], strides = [1, 1]} : vector<2x128xf32> to vector<2x32xf32>
    %160 = vector.extract_strided_slice %157 {offsets = [0, 64], sizes = [2, 32], strides = [1, 1]} : vector<2x128xf32> to vector<2x32xf32>
    %161 = vector.extract_strided_slice %157 {offsets = [0, 96], sizes = [2, 32], strides = [1, 1]} : vector<2x128xf32> to vector<2x32xf32>
    %162 = arith.mulf %159, %145 : vector<2x32xf32>
    %163 = arith.mulf %158, %160 : vector<2x32xf32>
    %164 = arith.addf %162, %163 : vector<2x32xf32>
    %165 = math.tanh %164 : vector<2x32xf32>
    %166 = arith.mulf %161, %165 : vector<2x32xf32>
    %c0_27 = arith.constant 0 : index
    %c0_28 = arith.constant 0 : index
    %167 = vector.load %arg6[%c0_27, %c0_28] : memref<32x8xf32, #tpu.memory_space<vmem>>, vector<32x8xf32>
    %cst_29 = arith.constant dense<0.000000e+00> : vector<2x8xf32>
    %168 = tpu.matmul %166, %167, %cst_29 {dimension_numbers = #tpu.dot_dimension_numbers<[1], [0], [0], [1], [0, 0, 1, 1], [], []>, precision = #tpu.contract_precision<fp32>} : vector<2x32xf32>, vector<32x8xf32>, vector<2x8xf32> -> vector<2x8xf32>
    %c0_30 = arith.constant 0 : index
    %c0_31 = arith.constant 0 : index
    %169 = vector.load %arg7[%c0_30, %c0_31] : memref<1x8xf32, #tpu.memory_space<vmem>>, vector<1x8xf32>
    %170 = vector.broadcast %169 : vector<1x8xf32> to vector<2x8xf32>
    %171 = arith.addf %168, %170 : vector<2x8xf32>
    %c0_32 = arith.constant 0 : index
    %c0_33 = arith.constant 0 : index
    %172 = vector.load %arg8[%c0_32, %c0_33] : memref<2x8xf32, #tpu.memory_space<vmem>>, vector<2x8xf32>
    tpu.vector_store %arg8[%c0_32, %c0_33], %171 {strides = array<i32>} : memref<2x8xf32, #tpu.memory_space<vmem>>, vector<2x8xf32>,
    return
  }
}

</mosaic_0001>

<llo_original>
// kernel: simple_lstm_forward.1
$region0: #{simple_lstm_forward.1}
  #allocation0 [shape = 'u32[]', space=smem, size = 0x4, offset = 0x4, fixed_abs, tag = 'smem constant byte address 0x4 - core index']
  #allocation1 [shape = 'u32[72,128]{1,0:T(1,128)}', space=vmem, size = 0x9000, scoped, tag = 'internal scratch']
  %s0 = inlined_call_operand.vmem [shape: f32[16,16], index: 0, kind: input, shape index: {}]
  %s1 = inlined_call_operand.vmem [shape: f32[2,32], index: 1, kind: input, shape index: {}]
  %s2 = inlined_call_operand.vmem [shape: f32[2,32], index: 2, kind: input, shape index: {}]
  %s3 = inlined_call_operand.vmem [shape: f32[16,128], index: 3, kind: input, shape index: {}]
  %s4 = inlined_call_operand.vmem [shape: f32[32,128], index: 4, kind: input, shape index: {}]
  %s5 = inlined_call_operand.vmem [shape: f32[1,128], index: 5, kind: input, shape index: {}]
  %s6 = inlined_call_operand.vmem [shape: f32[32,8], index: 6, kind: input, shape index: {}]
  %s7 = inlined_call_operand.vmem [shape: f32[1,8], index: 7, kind: input, shape index: {}]
  %s8 = inlined_call_operand.hbm [shape: f32[2,8], index: 8, kind: output, shape index: {}]
  %s9 = sld [smem:[#allocation0]]
  $region42: #{simple_lstm_forward.1} parent=0
    _
  %s11 = ssub.s32 1, %s9
  %s12 = scalar_select 0, %s11, %s9
  $region1: #{simple_lstm_forward.1} parent=0
    #allocation2 [shape = 'u8[1024]{0}', space=vmem, size = 0x400, scoped, tag = 'output window, operand 0, single buffered']
    #allocation3 [shape = 's32[1]{0}', space=sflag, size = 0x4, scoped, tag = 'scoped memory for simple_lstm_forward.1']
    %13 = vsyncpa [#allocation3], 0
    // Predicated region
    $region2: #{simple_lstm_forward.1} parent=1 // pred_check
      _
    $region3: #{simple_lstm_forward.1} parent=1 // pred_check_branch
      %15 = sbr.rel (0) target = $region5
    $region4: #{simple_lstm_forward.1} parent=1 // pred_region
      _
    $region5: #{simple_lstm_forward.1} parent=1 // pred_fallthru
      _
    // Predicated region
    $region6: #{simple_lstm_forward.1} parent=1 // pred_check
      _
    $region7: #{simple_lstm_forward.1} parent=1 // pred_check_branch
      %17 = sbr.rel (0) target = $region9
    $region8: #{simple_lstm_forward.1} parent=1 // pred_region
      _
    $region9: #{simple_lstm_forward.1} parent=1 // pred_fallthru
      _
    // Predicated region
    $region10: #{simple_lstm_forward.1} parent=1 // pred_check
      _
    $region11: #{simple_lstm_forward.1} parent=1 // pred_check_branch
      %19 = sbr.rel (0) target = $region13
    $region12: #{simple_lstm_forward.1} parent=1 // pred_region
      _
    $region13: #{simple_lstm_forward.1} parent=1 // pred_fallthru
      _
    // Predicated region
    $region14: #{simple_lstm_forward.1} parent=1 // pred_check
      _
    $region15: #{simple_lstm_forward.1} parent=1 // pred_check_branch
      %21 = sbr.rel (0) target = $region17
    $region16: #{simple_lstm_forward.1} parent=1 // pred_region
      _
    $region17: #{simple_lstm_forward.1} parent=1 // pred_fallthru
      _
    // Predicated region
    $region18: #{simple_lstm_forward.1} parent=1 // pred_check
      _
    $region19: #{simple_lstm_forward.1} parent=1 // pred_check_branch
      %23 = sbr.rel (0) target = $region21
    $region20: #{simple_lstm_forward.1} parent=1 // pred_region
      _
    $region21: #{simple_lstm_forward.1} parent=1 // pred_fallthru
      _
    // Predicated region
    $region22: #{simple_lstm_forward.1} parent=1 // pred_check
      _
    $region23: #{simple_lstm_forward.1} parent=1 // pred_check_branch
      %25 = sbr.rel (0) target = $region25
    $region24: #{simple_lstm_forward.1} parent=1 // pred_region
      _
    $region25: #{simple_lstm_forward.1} parent=1 // pred_fallthru
      _
    // Predicated region
    $region26: #{simple_lstm_forward.1} parent=1 // pred_check
      _
    $region27: #{simple_lstm_forward.1} parent=1 // pred_check_branch
      %27 = sbr.rel (0) target = $region29
    $region28: #{simple_lstm_forward.1} parent=1 // pred_region
      _
    $region29: #{simple_lstm_forward.1} parent=1 // pred_fallthru
      _
    // Predicated region
    $region30: #{simple_lstm_forward.1} parent=1 // pred_check
      _
    $region31: #{simple_lstm_forward.1} parent=1 // pred_check_branch
      %29 = sbr.rel (0) target = $region33
    $region32: #{simple_lstm_forward.1} parent=1 // pred_region
      _
    $region33: #{simple_lstm_forward.1} parent=1 // pred_fallthru
      _
    %v30 = vld [vmem:[%s0] sm:$0xff]
    %v31 = vld [vmem:[%s0 + $0x8] sm:$0xff]
    %v32 = vld [vmem:[%s3] sm:$0xff]
    %v33 = vld [vmem:[%s3 + $0x8] sm:$0xff]
    %v34 = vld [vmem:[%s5] sm:$0x1]
    %v36 = vperm.slane %v34, 0
    %vm38 = vcmask 130048
    %v40 = vsel %vm38, %v30, 0
    %v43 = vsel %vm38, %v31, 0
    %45 = vmatpush.msra.mxu0 0.0
    %46 = vmatpush.msra.mxu0 0.0
    %47 = vmatpush.msra.mxu0 0.0
    %48 = vmatpush.msra.mxu0 0.0
    %49 = vmatpush.msra.mxu0 0.0
    %50 = vmatpush.msra.mxu0 0.0
    %51 = vmatpush.msra.mxu0 0.0
    %52 = vmatpush.msra.mxu0 0.0
    %53 = vmatpush.msra.mxu0 0.0
    %54 = vmatpush.msra.mxu0 0.0
    %55 = vmatpush.msra.mxu0 0.0
    %56 = vmatpush.msra.mxu0 0.0
    %57 = vmatpush.msra.mxu0 0.0
    %58 = vmatpush.msra.mxu0 0.0
    %v59 = vand.u32 %v33, 4294901760
    %60 = vmatpush.msra.mxu0 %v59
    %v61 = vand.u32 %v32, 4294901760
    %62 = vmatpush.msra.mxu0 %v61
    %v63 = vand.u32 %v40, 4294901760
    %v64 = vsub.f32 %v40, %v63
    %v65 = vand.u32 %v64, 4294901760
    %v66 = vsub.f32 %v64, %v65
    %v67 = vand.u32 %v66, 4294901760
    %68 = vmatmul.f32.gmra.mxu0 %v67
    %v69 = vpop.f32.mrf.mxu0
    %v70 = vadd.f32 %v36, %v69
    %v71 = vand.u32 %v43, 4294901760
    %v72 = vsub.f32 %v43, %v71
    %v73 = vand.u32 %v72, 4294901760
    %v74 = vsub.f32 %v72, %v73
    %v75 = vand.u32 %v74, 4294901760
    %76 = vmatmul.f32.gmra.mxu0 %v75
    %v77 = vpop.f32.mrf.mxu0
    %v78 = vadd.f32 %v36, %v77
    %79 = vdwg.mxu0
    %80 = vmatpush.msra.mxu0 0.0
    %81 = vmatpush.msra.mxu0 0.0
    %82 = vmatpush.msra.mxu0 0.0
    %83 = vmatpush.msra.mxu0 0.0
    %84 = vmatpush.msra.mxu0 0.0
    %85 = vmatpush.msra.mxu0 0.0
    %86 = vmatpush.msra.mxu0 0.0
    %87 = vmatpush.msra.mxu0 0.0
    %88 = vmatpush.msra.mxu0 0.0
    %89 = vmatpush.msra.mxu0 0.0
    %90 = vmatpush.msra.mxu0 0.0
    %91 = vmatpush.msra.mxu0 0.0
    %92 = vmatpush.msra.mxu0 0.0
    %93 = vmatpush.msra.mxu0 0.0
    %v94 = vand.u32 %v33, 4294901760
    %v95 = vsub.f32 %v33, %v94
    %v96 = vand.u32 %v95, 4294901760
    %v97 = vsub.f32 %v95, %v96
    %v98 = vand.u32 %v97, 4294901760
    %99 = vmatpush.msra.mxu0 %v98
    %v100 = vand.u32 %v32, 4294901760
    %v101 = vsub.f32 %v32, %v100
    %v102 = vand.u32 %v101, 4294901760
    %v103 = vsub.f32 %v101, %v102
    %v104 = vand.u32 %v103, 4294901760
    %105 = vmatpush.msra.mxu0 %v104
    %v106 = vand.u32 %v40, 4294901760
    %107 = vmatmul.f32.gmra.mxu0 %v106
    %v108 = vpop.f32.mrf.mxu0
    %v109 = vadd.f32 %v70, %v108
    %v110 = vand.u32 %v43, 4294901760
    %111 = vmatmul.f32.gmra.mxu0 %v110
    %v112 = vpop.f32.mrf.mxu0
    %v113 = vadd.f32 %v78, %v112
    %114 = vdwg.mxu0
    %115 = vmatpush.msra.mxu0 0.0
    %116 = vmatpush.msra.mxu0 0.0
    %117 = vmatpush.msra.mxu0 0.0
    %118 = vmatpush.msra.mxu0 0.0
    %119 = vmatpush.msra.mxu0 0.0
    %120 = vmatpush.msra.mxu0 0.0
    %121 = vmatpush.msra.mxu0 0.0
    %122 = vmatpush.msra.mxu0 0.0
    %123 = vmatpush.msra.mxu0 0.0
    %124 = vmatpush.msra.mxu0 0.0
    %125 = vmatpush.msra.mxu0 0.0
    %126 = vmatpush.msra.mxu0 0.0
    %127 = vmatpush.msra.mxu0 0.0
    %128 = vmatpush.msra.mxu0 0.0
    %v129 = vand.u32 %v33, 4294901760
    %v130 = vsub.f32 %v33, %v129
    %131 = vmatpush.msra.mxu0 %v130
    %v132 = vand.u32 %v32, 4294901760
    %v133 = vsub.f32 %v32, %v132
    %134 = vmatpush.msra.mxu0 %v133
    %v135 = vand.u32 %v40, 4294901760
    %v136 = vsub.f32 %v40, %v135
    %137 = vmatmul.f32.gmra.mxu0 %v136
    %v138 = vpop.f32.mrf.mxu0
    %v139 = vadd.f32 %v109, %v138
    %v140 = vand.u32 %v43, 4294901760
    %v141 = vsub.f32 %v43, %v140
    %142 = vmatmul.f32.gmra.mxu0 %v141
    %v143 = vpop.f32.mrf.mxu0
    %v144 = vadd.f32 %v113, %v143
    %145 = vdwg.mxu0
    %146 = vmatpush.msra.mxu0 0.0
    %147 = vmatpush.msra.mxu0 0.0
    %148 = vmatpush.msra.mxu0 0.0
    %149 = vmatpush.msra.mxu0 0.0
    %150 = vmatpush.msra.mxu0 0.0
    %151 = vmatpush.msra.mxu0 0.0
    %152 = vmatpush.msra.mxu0 0.0
    %153 = vmatpush.msra.mxu0 0.0
    %154 = vmatpush.msra.mxu0 0.0
    %155 = vmatpush.msra.mxu0 0.0
    %156 = vmatpush.msra.mxu0 0.0
    %157 = vmatpush.msra.mxu0 0.0
    %158 = vmatpush.msra.mxu0 0.0
    %159 = vmatpush.msra.mxu0 0.0
    %v160 = vand.u32 %v33, 4294901760
    %161 = vmatpush.msra.mxu0 %v160
    %v162 = vand.u32 %v32, 4294901760
    %163 = vmatpush.msra.mxu0 %v162
    %v164 = vand.u32 %v40, 4294901760
    %v165 = vsub.f32 %v40, %v164
    %v166 = vand.u32 %v165, 4294901760
    %167 = vmatmul.f32.gmra.mxu0 %v166
    %v168 = vpop.f32.mrf.mxu0
    %v169 = vadd.f32 %v139, %v168
    %v170 = vand.u32 %v43, 4294901760
    %v171 = vsub.f32 %v43, %v170
    %v172 = vand.u32 %v171, 4294901760
    %173 = vmatmul.f32.gmra.mxu0 %v172
    %v174 = vpop.f32.mrf.mxu0
    %v175 = vadd.f32 %v144, %v174
    %176 = vdwg.mxu0
    %177 = vmatpush.msra.mxu0 0.0
    %178 = vmatpush.msra.mxu0 0.0
    %179 = vmatpush.msra.mxu0 0.0
    %180 = vmatpush.msra.mxu0 0.0
    %181 = vmatpush.msra.mxu0 0.0
    %182 = vmatpush.msra.mxu0 0.0
    %183 = vmatpush.msra.mxu0 0.0
    %184 = vmatpush.msra.mxu0 0.0
    %185 = vmatpush.msra.mxu0 0.0
    %186 = vmatpush.msra.mxu0 0.0
    %187 = vmatpush.msra.mxu0 0.0
    %188 = vmatpush.msra.mxu0 0.0
    %189 = vmatpush.msra.mxu0 0.0
    %190 = vmatpush.msra.mxu0 0.0
    %v191 = vand.u32 %v33, 4294901760
    %v192 = vsub.f32 %v33, %v191
    %v193 = vand.u32 %v192, 4294901760
    %194 = vmatpush.msra.mxu0 %v193
    %v195 = vand.u32 %v32, 4294901760
    %v196 = vsub.f32 %v32, %v195
    %v197 = vand.u32 %v196, 4294901760
    %198 = vmatpush.msra.mxu0 %v197
    %v199 = vand.u32 %v40, 4294901760
    %200 = vmatmul.f32.gmra.mxu0 %v199
    %v201 = vpop.f32.mrf.mxu0
    %v202 = vadd.f32 %v169, %v201
    %v203 = vand.u32 %v43, 4294901760
    %204 = vmatmul.f32.gmra.mxu0 %v203
    %v205 = vpop.f32.mrf.mxu0
    %v206 = vadd.f32 %v175, %v205
    %207 = vdwg.mxu0
    %208 = vmatpush.msra.mxu0 0.0
    %209 = vmatpush.msra.mxu0 0.0
    %210 = vmatpush.msra.mxu0 0.0
    %211 = vmatpush.msra.mxu0 0.0
    %212 = vmatpush.msra.mxu0 0.0
    %213 = vmatpush.msra.mxu0 0.0
    %214 = vmatpush.msra.mxu0 0.0
    %215 = vmatpush.msra.mxu0 0.0
    %216 = vmatpush.msra.mxu0 0.0
    %217 = vmatpush.msra.mxu0 0.0
    %218 = vmatpush.msra.mxu0 0.0
    %219 = vmatpush.msra.mxu0 0.0
    %220 = vmatpush.msra.mxu0 0.0
    %221 = vmatpush.msra.mxu0 0.0
    %v222 = vand.u32 %v33, 4294901760
    %223 = vmatpush.msra.mxu0 %v222
    %v224 = vand.u32 %v32, 4294901760
    %225 = vmatpush.msra.mxu0 %v224
    %v226 = vand.u32 %v40, 4294901760
    %227 = vmatmul.f32.gmra.mxu0 %v226
    %v228 = vpop.f32.mrf.mxu0
    %v229 = vadd.f32 %v202, %v228
    %v230 = vand.u32 %v43, 4294901760
    %231 = vmatmul.f32.gmra.mxu0 %v230
    %v232 = vpop.f32.mrf.mxu0
    %v233 = vadd.f32 %v206, %v232
    %234 = vdwg.mxu0
    %v235 = vld [vmem:[%s4] sm:$0xff]
    %v236 = vld [vmem:[%s4 + $0x8] sm:$0xff]
    %v237 = vld [vmem:[%s4 + $0x10] sm:$0xff]
    %v238 = vld [vmem:[%s4 + $0x18] sm:$0xff]
    %v239 = vld [vmem:[%s1] sm:$0x3]
    %v240 = vld [vmem:[%s2] sm:$0x3]
    %v241 = vlaneseq
    %v242 = vand.u32 %v241, 127
    %vm243 = vcmp.ge.s32.totalorder %v242, 64
    %vm244 = vcmp.lt.s32.totalorder %v242, 96
    %vm245 = vmand %vm243, %vm244
    %vm246 = vcmask 261120
    %v248 = vsel %vm246, %v239, 0
    %250 = vmatpush.msra.mxu0 0.0
    %251 = vmatpush.msra.mxu0 0.0
    %252 = vmatpush.msra.mxu0 0.0
    %253 = vmatpush.msra.mxu0 0.0
    %254 = vmatpush.msra.mxu0 0.0
    %255 = vmatpush.msra.mxu0 0.0
    %256 = vmatpush.msra.mxu0 0.0
    %257 = vmatpush.msra.mxu0 0.0
    %258 = vmatpush.msra.mxu0 0.0
    %259 = vmatpush.msra.mxu0 0.0
    %260 = vmatpush.msra.mxu0 0.0
    %261 = vmatpush.msra.mxu0 0.0
    %v262 = vand.u32 %v238, 4294901760
    %263 = vmatpush.msra.mxu0 %v262
    %v264 = vand.u32 %v237, 4294901760
    %265 = vmatpush.msra.mxu0 %v264
    %v266 = vand.u32 %v236, 4294901760
    %267 = vmatpush.msra.mxu0 %v266
    %v268 = vand.u32 %v235, 4294901760
    %269 = vmatpush.msra.mxu0 %v268
    %v270 = vand.u32 %v248, 4294901760
    %v271 = vsub.f32 %v248, %v270
    %v272 = vand.u32 %v271, 4294901760
    %v273 = vsub.f32 %v271, %v272
    %v274 = vand.u32 %v273, 4294901760
    %275 = vmatmul.f32.gmra.mxu0 %v274
    %v276 = vpop.f32.mrf.mxu0
    %v277 = vadd.f32 0.0, %v276
    %278 = vdwg.mxu0
    %279 = vmatpush.msra.mxu0 0.0
    %280 = vmatpush.msra.mxu0 0.0
    %281 = vmatpush.msra.mxu0 0.0
    %282 = vmatpush.msra.mxu0 0.0
    %283 = vmatpush.msra.mxu0 0.0
    %284 = vmatpush.msra.mxu0 0.0
    %285 = vmatpush.msra.mxu0 0.0
    %286 = vmatpush.msra.mxu0 0.0
    %287 = vmatpush.msra.mxu0 0.0
    %288 = vmatpush.msra.mxu0 0.0
    %289 = vmatpush.msra.mxu0 0.0
    %290 = vmatpush.msra.mxu0 0.0
    %v291 = vand.u32 %v238, 4294901760
    %v292 = vsub.f32 %v238, %v291
    %v293 = vand.u32 %v292, 4294901760
    %v294 = vsub.f32 %v292, %v293
    %v295 = vand.u32 %v294, 4294901760
    %296 = vmatpush.msra.mxu0 %v295
    %v297 = vand.u32 %v237, 4294901760
    %v298 = vsub.f32 %v237, %v297
    %v299 = vand.u32 %v298, 4294901760
    %v300 = vsub.f32 %v298, %v299
    %v301 = vand.u32 %v300, 4294901760
    %302 = vmatpush.msra.mxu0 %v301
    %v303 = vand.u32 %v236, 4294901760
    %v304 = vsub.f32 %v236, %v303
    %v305 = vand.u32 %v304, 4294901760
    %v306 = vsub.f32 %v304, %v305
    %v307 = vand.u32 %v306, 4294901760
    %308 = vmatpush.msra.mxu0 %v307
    %v309 = vand.u32 %v235, 4294901760
    %v310 = vsub.f32 %v235, %v309
    %v311 = vand.u32 %v310, 4294901760
    %v312 = vsub.f32 %v310, %v311
    %v313 = vand.u32 %v312, 4294901760
    %314 = vmatpush.msra.mxu0 %v313
    %v315 = vand.u32 %v248, 4294901760
    %316 = vmatmul.f32.gmra.mxu0 %v315
    %v317 = vpop.f32.mrf.mxu0
    %v318 = vadd.f32 %v277, %v317
    %319 = vdwg.mxu0
    %320 = vmatpush.msra.mxu0 0.0
    %321 = vmatpush.msra.mxu0 0.0
    %322 = vmatpush.msra.mxu0 0.0
    %323 = vmatpush.msra.mxu0 0.0
    %324 = vmatpush.msra.mxu0 0.0
    %325 = vmatpush.msra.mxu0 0.0
    %326 = vmatpush.msra.mxu0 0.0
    %327 = vmatpush.msra.mxu0 0.0
    %328 = vmatpush.msra.mxu0 0.0
    %329 = vmatpush.msra.mxu0 0.0
    %330 = vmatpush.msra.mxu0 0.0
    %331 = vmatpush.msra.mxu0 0.0
    %v332 = vand.u32 %v238, 4294901760
    %v333 = vsub.f32 %v238, %v332
    %334 = vmatpush.msra.mxu0 %v333
    %v335 = vand.u32 %v237, 4294901760
    %v336 = vsub.f32 %v237, %v335
    %337 = vmatpush.msra.mxu0 %v336
    %v338 = vand.u32 %v236, 4294901760
    %v339 = vsub.f32 %v236, %v338
    %340 = vmatpush.msra.mxu0 %v339
    %v341 = vand.u32 %v235, 4294901760
    %v342 = vsub.f32 %v235, %v341
    %343 = vmatpush.msra.mxu0 %v342
    %v344 = vand.u32 %v248, 4294901760
    %v345 = vsub.f32 %v248, %v344
    %346 = vmatmul.f32.gmra.mxu0 %v345
    %v347 = vpop.f32.mrf.mxu0
    %v348 = vadd.f32 %v318, %v347
    %349 = vdwg.mxu0
    %350 = vmatpush.msra.mxu0 0.0
    %351 = vmatpush.msra.mxu0 0.0
    %352 = vmatpush.msra.mxu0 0.0
    %353 = vmatpush.msra.mxu0 0.0
    %354 = vmatpush.msra.mxu0 0.0
    %355 = vmatpush.msra.mxu0 0.0
    %356 = vmatpush.msra.mxu0 0.0
    %357 = vmatpush.msra.mxu0 0.0
    %358 = vmatpush.msra.mxu0 0.0
    %359 = vmatpush.msra.mxu0 0.0
    %360 = vmatpush.msra.mxu0 0.0
    %361 = vmatpush.msra.mxu0 0.0
    %v362 = vand.u32 %v238, 4294901760
    %363 = vmatpush.msra.mxu0 %v362
    %v364 = vand.u32 %v237, 4294901760
    %365 = vmatpush.msra.mxu0 %v364
    %v366 = vand.u32 %v236, 4294901760
    %367 = vmatpush.msra.mxu0 %v366
    %v368 = vand.u32 %v235, 4294901760
    %369 = vmatpush.msra.mxu0 %v368
    %v370 = vand.u32 %v248, 4294901760
    %v371 = vsub.f32 %v248, %v370
    %v372 = vand.u32 %v371, 4294901760
    %373 = vmatmul.f32.gmra.mxu0 %v372
    %v374 = vpop.f32.mrf.mxu0
    %v375 = vadd.f32 %v348, %v374
    %376 = vdwg.mxu0
    %377 = vmatpush.msra.mxu0 0.0
    %378 = vmatpush.msra.mxu0 0.0
    %379 = vmatpush.msra.mxu0 0.0
    %380 = vmatpush.msra.mxu0 0.0
    %381 = vmatpush.msra.mxu0 0.0
    %382 = vmatpush.msra.mxu0 0.0
    %383 = vmatpush.msra.mxu0 0.0
    %384 = vmatpush.msra.mxu0 0.0
    %385 = vmatpush.msra.mxu0 0.0
    %386 = vmatpush.msra.mxu0 0.0
    %387 = vmatpush.msra.mxu0 0.0
    %388 = vmatpush.msra.mxu0 0.0
    %v389 = vand.u32 %v238, 4294901760
    %v390 = vsub.f32 %v238, %v389
    %v391 = vand.u32 %v390, 4294901760
    %392 = vmatpush.msra.mxu0 %v391
    %v393 = vand.u32 %v237, 4294901760
    %v394 = vsub.f32 %v237, %v393
    %v395 = vand.u32 %v394, 4294901760
    %396 = vmatpush.msra.mxu0 %v395
    %v397 = vand.u32 %v236, 4294901760
    %v398 = vsub.f32 %v236, %v397
    %v399 = vand.u32 %v398, 4294901760
    %400 = vmatpush.msra.mxu0 %v399
    %v401 = vand.u32 %v235, 4294901760
    %v402 = vsub.f32 %v235, %v401
    %v403 = vand.u32 %v402, 4294901760
    %404 = vmatpush.msra.mxu0 %v403
    %v405 = vand.u32 %v248, 4294901760
    %406 = vmatmul.f32.gmra.mxu0 %v405
    %v407 = vpop.f32.mrf.mxu0
    %v408 = vadd.f32 %v375, %v407
    %409 = vdwg.mxu0
    %410 = vmatpush.msra.mxu0 0.0
    %411 = vmatpush.msra.mxu0 0.0
    %412 = vmatpush.msra.mxu0 0.0
    %413 = vmatpush.msra.mxu0 0.0
    %414 = vmatpush.msra.mxu0 0.0
    %415 = vmatpush.msra.mxu0 0.0
    %416 = vmatpush.msra.mxu0 0.0
    %417 = vmatpush.msra.mxu0 0.0
    %418 = vmatpush.msra.mxu0 0.0
    %419 = vmatpush.msra.mxu0 0.0
    %420 = vmatpush.msra.mxu0 0.0
    %421 = vmatpush.msra.mxu0 0.0
    %v422 = vand.u32 %v238, 4294901760
    %423 = vmatpush.msra.mxu0 %v422
    %v424 = vand.u32 %v237, 4294901760
    %425 = vmatpush.msra.mxu0 %v424
    %v426 = vand.u32 %v236, 4294901760
    %427 = vmatpush.msra.mxu0 %v426
    %v428 = vand.u32 %v235, 4294901760
    %429 = vmatpush.msra.mxu0 %v428
    %v430 = vand.u32 %v248, 4294901760
    %431 = vmatmul.f32.gmra.mxu0 %v430
    %v432 = vpop.f32.mrf.mxu0
    %v433 = vadd.f32 %v408, %v432
    %434 = vdwg.mxu0
    %v435 = vadd.f32 %v229, %v433
    %v436 = vxor.u32 %v435, 2147483648
    %v437 = vmul.f32 %v436, 1.442695
    %v438 = vpow.pop %v437
    %v439 = vadd.f32 %v438, 1.0
    %v440 = vrcp.pop %v439
    %v441 = vmul.f32 %v439, %v440
    %v442 = vsub.f32 1.0, %v441
    %v443 = vmul.f32 %v440, %v442
    %v444 = vadd.f32 %v440, %v443
    %vm445 = vweird.f32 %v439
    %vm446 = vweird.f32 %v440
    %vm447 = vmor %vm445, %vm446
    %v448 = vsel %vm447, %v440, %v444
    %v449 = vand.u32 2147483647, %v439
    %vm450 = vcmp.eq.f32.partialorder %v449, 8.507059e+37
    %v451 = vand.u32 %v439, 2147483648
    %v452 = vor.u32 1.1754944e-38, %v451
    %v453 = vsel %vm450, %v452, %v448
    %v454 = vmul.f32 1.0, %v453
    %v455 = vtanh.pop %v435
    %v456 = vsel %vm245, %v455, %v454
    %458 = vrot.lane.b32.xlu0 %v240, 32
    %v459 = vpop.permute.xlu0 %458
    %v461 = vmul.f32 %v456, %v459
    %463 = vrot.lane.b32.xlu0 %v456, 64
    %v464 = vpop.permute.xlu0 %463
    %v466 = vmul.f32 %v456, %v464
    %468 = vrot.lane.b32.xlu0 %v466, 32
    %v469 = vpop.permute.xlu0 %468
    %v471 = vadd.f32 %v461, %v469
    %v472 = vtanh.pop %v471
    %474 = vrot.lane.b32.xlu0 %v472, 64
    %v475 = vpop.permute.xlu0 %474
    %v477 = vmul.f32 %v456, %v475
    %479 = vrot.lane.b32.xlu0 %v477, 32
    %v480 = vpop.permute.xlu0 %479
    %v481 = vsel %vm246, %v480, 0
    %483 = vmatpush.msra.mxu0 0.0
    %484 = vmatpush.msra.mxu0 0.0
    %485 = vmatpush.msra.mxu0 0.0
    %486 = vmatpush.msra.mxu0 0.0
    %487 = vmatpush.msra.mxu0 0.0
    %488 = vmatpush.msra.mxu0 0.0
    %489 = vmatpush.msra.mxu0 0.0
    %490 = vmatpush.msra.mxu0 0.0
    %491 = vmatpush.msra.mxu0 0.0
    %492 = vmatpush.msra.mxu0 0.0
    %493 = vmatpush.msra.mxu0 0.0
    %494 = vmatpush.msra.mxu0 0.0
    %v495 = vand.u32 %v238, 4294901760
    %496 = vmatpush.msra.mxu0 %v495
    %v497 = vand.u32 %v237, 4294901760
    %498 = vmatpush.msra.mxu0 %v497
    %v499 = vand.u32 %v236, 4294901760
    %500 = vmatpush.msra.mxu0 %v499
    %v501 = vand.u32 %v235, 4294901760
    %502 = vmatpush.msra.mxu0 %v501
    %v503 = vand.u32 %v481, 4294901760
    %v504 = vsub.f32 %v481, %v503
    %v505 = vand.u32 %v504, 4294901760
    %v506 = vsub.f32 %v504, %v505
    %v507 = vand.u32 %v506, 4294901760
    %508 = vmatmul.f32.gmra.mxu0 %v507
    %v509 = vpop.f32.mrf.mxu0
    %v510 = vadd.f32 0.0, %v509
    %511 = vdwg.mxu0
    %512 = vmatpush.msra.mxu0 0.0
    %513 = vmatpush.msra.mxu0 0.0
    %514 = vmatpush.msra.mxu0 0.0
    %515 = vmatpush.msra.mxu0 0.0
    %516 = vmatpush.msra.mxu0 0.0
    %517 = vmatpush.msra.mxu0 0.0
    %518 = vmatpush.msra.mxu0 0.0
    %519 = vmatpush.msra.mxu0 0.0
    %520 = vmatpush.msra.mxu0 0.0
    %521 = vmatpush.msra.mxu0 0.0
    %522 = vmatpush.msra.mxu0 0.0
    %523 = vmatpush.msra.mxu0 0.0
    %v524 = vand.u32 %v238, 4294901760
    %v525 = vsub.f32 %v238, %v524
    %v526 = vand.u32 %v525, 4294901760
    %v527 = vsub.f32 %v525, %v526
    %v528 = vand.u32 %v527, 4294901760
    %529 = vmatpush.msra.mxu0 %v528
    %v530 = vand.u32 %v237, 4294901760
    %v531 = vsub.f32 %v237, %v530
    %v532 = vand.u32 %v531, 4294901760
    %v533 = vsub.f32 %v531, %v532
    %v534 = vand.u32 %v533, 4294901760
    %535 = vmatpush.msra.mxu0 %v534
    %v536 = vand.u32 %v236, 4294901760
    %v537 = vsub.f32 %v236, %v536
    %v538 = vand.u32 %v537, 4294901760
    %v539 = vsub.f32 %v537, %v538
    %v540 = vand.u32 %v539, 4294901760
    %541 = vmatpush.msra.mxu0 %v540
    %v542 = vand.u32 %v235, 4294901760
    %v543 = vsub.f32 %v235, %v542
    %v544 = vand.u32 %v543, 4294901760
    %v545 = vsub.f32 %v543, %v544
    %v546 = vand.u32 %v545, 4294901760
    %547 = vmatpush.msra.mxu0 %v546
    %v548 = vand.u32 %v481, 4294901760
    %549 = vmatmul.f32.gmra.mxu0 %v548
    %v550 = vpop.f32.mrf.mxu0
    %v551 = vadd.f32 %v510, %v550
    %552 = vdwg.mxu0
    %553 = vmatpush.msra.mxu0 0.0
    %554 = vmatpush.msra.mxu0 0.0
    %555 = vmatpush.msra.mxu0 0.0
    %556 = vmatpush.msra.mxu0 0.0
    %557 = vmatpush.msra.mxu0 0.0
    %558 = vmatpush.msra.mxu0 0.0
    %559 = vmatpush.msra.mxu0 0.0
    %560 = vmatpush.msra.mxu0 0.0
    %561 = vmatpush.msra.mxu0 0.0
    %562 = vmatpush.msra.mxu0 0.0
    %563 = vmatpush.msra.mxu0 0.0
    %564 = vmatpush.msra.mxu0 0.0
    %v565 = vand.u32 %v238, 4294901760
    %v566 = vsub.f32 %v238, %v565
    %567 = vmatpush.msra.mxu0 %v566
    %v568 = vand.u32 %v237, 4294901760
    %v569 = vsub.f32 %v237, %v568
    %570 = vmatpush.msra.mxu0 %v569
    %v571 = vand.u32 %v236, 4294901760
    %v572 = vsub.f32 %v236, %v571
    %573 = vmatpush.msra.mxu0 %v572
    %v574 = vand.u32 %v235, 4294901760
    %v575 = vsub.f32 %v235, %v574
    %576 = vmatpush.msra.mxu0 %v575
    %v577 = vand.u32 %v481, 4294901760
    %v578 = vsub.f32 %v481, %v577
    %579 = vmatmul.f32.gmra.mxu0 %v578
    %v580 = vpop.f32.mrf.mxu0
    %v581 = vadd.f32 %v551, %v580
    %582 = vdwg.mxu0
    %583 = vmatpush.msra.mxu0 0.0
    %584 = vmatpush.msra.mxu0 0.0
    %585 = vmatpush.msra.mxu0 0.0
    %586 = vmatpush.msra.mxu0 0.0
    %587 = vmatpush.msra.mxu0 0.0
    %588 = vmatpush.msra.mxu0 0.0
    %589 = vmatpush.msra.mxu0 0.0
    %590 = vmatpush.msra.mxu0 0.0
    %591 = vmatpush.msra.mxu0 0.0
    %592 = vmatpush.msra.mxu0 0.0
    %593 = vmatpush.msra.mxu0 0.0
    %594 = vmatpush.msra.mxu0 0.0
    %v595 = vand.u32 %v238, 4294901760
    %596 = vmatpush.msra.mxu0 %v595
    %v597 = vand.u32 %v237, 4294901760
    %598 = vmatpush.msra.mxu0 %v597
    %v599 = vand.u32 %v236, 4294901760
    %600 = vmatpush.msra.mxu0 %v599
    %v601 = vand.u32 %v235, 4294901760
    %602 = vmatpush.msra.mxu0 %v601
    %v603 = vand.u32 %v481, 4294901760
    %v604 = vsub.f32 %v481, %v603
    %v605 = vand.u32 %v604, 4294901760
    %606 = vmatmul.f32.gmra.mxu0 %v605
    %v607 = vpop.f32.mrf.mxu0
    %v608 = vadd.f32 %v581, %v607
    %609 = vdwg.mxu0
    %610 = vmatpush.msra.mxu0 0.0
    %611 = vmatpush.msra.mxu0 0.0
    %612 = vmatpush.msra.mxu0 0.0
    %613 = vmatpush.msra.mxu0 0.0
    %614 = vmatpush.msra.mxu0 0.0
    %615 = vmatpush.msra.mxu0 0.0
    %616 = vmatpush.msra.mxu0 0.0
    %617 = vmatpush.msra.mxu0 0.0
    %618 = vmatpush.msra.mxu0 0.0
    %619 = vmatpush.msra.mxu0 0.0
    %620 = vmatpush.msra.mxu0 0.0
    %621 = vmatpush.msra.mxu0 0.0
    %v622 = vand.u32 %v238, 4294901760
    %v623 = vsub.f32 %v238, %v622
    %v624 = vand.u32 %v623, 4294901760
    %625 = vmatpush.msra.mxu0 %v624
    %v626 = vand.u32 %v237, 4294901760
    %v627 = vsub.f32 %v237, %v626
    %v628 = vand.u32 %v627, 4294901760
    %629 = vmatpush.msra.mxu0 %v628
    %v630 = vand.u32 %v236, 4294901760
    %v631 = vsub.f32 %v236, %v630
    %v632 = vand.u32 %v631, 4294901760
    %633 = vmatpush.msra.mxu0 %v632
    %v634 = vand.u32 %v235, 4294901760
    %v635 = vsub.f32 %v235, %v634
    %v636 = vand.u32 %v635, 4294901760
    %637 = vmatpush.msra.mxu0 %v636
    %v638 = vand.u32 %v481, 4294901760
    %639 = vmatmul.f32.gmra.mxu0 %v638
    %v640 = vpop.f32.mrf.mxu0
    %v641 = vadd.f32 %v608, %v640
    %642 = vdwg.mxu0
    %643 = vmatpush.msra.mxu0 0.0
    %644 = vmatpush.msra.mxu0 0.0
    %645 = vmatpush.msra.mxu0 0.0
    %646 = vmatpush.msra.mxu0 0.0
    %647 = vmatpush.msra.mxu0 0.0
    %648 = vmatpush.msra.mxu0 0.0
    %649 = vmatpush.msra.mxu0 0.0
    %650 = vmatpush.msra.mxu0 0.0
    %651 = vmatpush.msra.mxu0 0.0
    %652 = vmatpush.msra.mxu0 0.0
    %653 = vmatpush.msra.mxu0 0.0
    %654 = vmatpush.msra.mxu0 0.0
    %v655 = vand.u32 %v238, 4294901760
    %656 = vmatpush.msra.mxu0 %v655
    %v657 = vand.u32 %v237, 4294901760
    %658 = vmatpush.msra.mxu0 %v657
    %v659 = vand.u32 %v236, 4294901760
    %660 = vmatpush.msra.mxu0 %v659
    %v661 = vand.u32 %v235, 4294901760
    %662 = vmatpush.msra.mxu0 %v661
    %v663 = vand.u32 %v481, 4294901760
    %664 = vmatmul.f32.gmra.mxu0 %v663
    %v665 = vpop.f32.mrf.mxu0
    %v666 = vadd.f32 %v641, %v665
    %667 = vdwg.mxu0
    %v669 = vrot.slane %v666, 6
    %v671 = vadd.f32 %v229, %v669
    %v672 = vxor.u32 %v671, 2147483648
    %v673 = vmul.f32 %v672, 1.442695
    %v674 = vpow.pop %v673
    %v675 = vadd.f32 %v674, 1.0
    %v676 = vrcp.pop %v675
    %v677 = vmul.f32 %v675, %v676
    %v678 = vsub.f32 1.0, %v677
    %v679 = vmul.f32 %v676, %v678
    %v680 = vadd.f32 %v676, %v679
    %vm681 = vweird.f32 %v675
    %vm682 = vweird.f32 %v676
    %vm683 = vmor %vm681, %vm682
    %v684 = vsel %vm683, %v676, %v680
    %v685 = vand.u32 2147483647, %v675
    %vm686 = vcmp.eq.f32.partialorder %v685, 8.507059e+37
    %v687 = vand.u32 %v675, 2147483648
    %v688 = vor.u32 1.1754944e-38, %v687
    %v689 = vsel %vm686, %v688, %v684
    %v690 = vmul.f32 1.0, %v689
    %v691 = vtanh.pop %v671
    %v692 = vsel %vm245, %v691, %v690
    %v694 = vrot.slane %v471, 6
    %v696 = vmul.f32 %v692, %v694
    %698 = vrot.lane.b32.xlu0 %v692, 64
    %v699 = vpop.permute.xlu0 %698
    %v701 = vmul.f32 %v692, %v699
    %703 = vrot.lane.b32.xlu0 %v701, 32
    %v704 = vpop.permute.xlu0 %703
    %v706 = vadd.f32 %v696, %v704
    %v707 = vtanh.pop %v706
    %709 = vrot.lane.b32.xlu0 %v707, 64
    %v710 = vpop.permute.xlu0 %709
    %v712 = vmul.f32 %v692, %v710
    %v714 = vrot.slane %v712, 2
    %715 = vrot.lane.b32.xlu0 %v714, 32
    %v716 = vpop.permute.xlu0 %715
    %v717 = vsel %vm246, %v716, 0
    %719 = vmatpush.msra.mxu0 0.0
    %720 = vmatpush.msra.mxu0 0.0
    %721 = vmatpush.msra.mxu0 0.0
    %722 = vmatpush.msra.mxu0 0.0
    %723 = vmatpush.msra.mxu0 0.0
    %724 = vmatpush.msra.mxu0 0.0
    %725 = vmatpush.msra.mxu0 0.0
    %726 = vmatpush.msra.mxu0 0.0
    %727 = vmatpush.msra.mxu0 0.0
    %728 = vmatpush.msra.mxu0 0.0
    %729 = vmatpush.msra.mxu0 0.0
    %730 = vmatpush.msra.mxu0 0.0
    %v731 = vand.u32 %v238, 4294901760
    %732 = vmatpush.msra.mxu0 %v731
    %v733 = vand.u32 %v237, 4294901760
    %734 = vmatpush.msra.mxu0 %v733
    %v735 = vand.u32 %v236, 4294901760
    %736 = vmatpush.msra.mxu0 %v735
    %v737 = vand.u32 %v235, 4294901760
    %738 = vmatpush.msra.mxu0 %v737
    %v739 = vand.u32 %v717, 4294901760
    %v740 = vsub.f32 %v717, %v739
    %v741 = vand.u32 %v740, 4294901760
    %v742 = vsub.f32 %v740, %v741
    %v743 = vand.u32 %v742, 4294901760
    %744 = vmatmul.f32.gmra.mxu0 %v743
    %v745 = vpop.f32.mrf.mxu0
    %v746 = vadd.f32 0.0, %v745
    %747 = vdwg.mxu0
    %748 = vmatpush.msra.mxu0 0.0
    %749 = vmatpush.msra.mxu0 0.0
    %750 = vmatpush.msra.mxu0 0.0
    %751 = vmatpush.msra.mxu0 0.0
    %752 = vmatpush.msra.mxu0 0.0
    %753 = vmatpush.msra.mxu0 0.0
    %754 = vmatpush.msra.mxu0 0.0
    %755 = vmatpush.msra.mxu0 0.0
    %756 = vmatpush.msra.mxu0 0.0
    %757 = vmatpush.msra.mxu0 0.0
    %758 = vmatpush.msra.mxu0 0.0
    %759 = vmatpush.msra.mxu0 0.0
    %v760 = vand.u32 %v238, 4294901760
    %v761 = vsub.f32 %v238, %v760
    %v762 = vand.u32 %v761, 4294901760
    %v763 = vsub.f32 %v761, %v762
    %v764 = vand.u32 %v763, 4294901760
    %765 = vmatpush.msra.mxu0 %v764
    %v766 = vand.u32 %v237, 4294901760
    %v767 = vsub.f32 %v237, %v766
    %v768 = vand.u32 %v767, 4294901760
    %v769 = vsub.f32 %v767, %v768
    %v770 = vand.u32 %v769, 4294901760
    %771 = vmatpush.msra.mxu0 %v770
    %v772 = vand.u32 %v236, 4294901760
    %v773 = vsub.f32 %v236, %v772
    %v774 = vand.u32 %v773, 4294901760
    %v775 = vsub.f32 %v773, %v774
    %v776 = vand.u32 %v775, 4294901760
    %777 = vmatpush.msra.mxu0 %v776
    %v778 = vand.u32 %v235, 4294901760
    %v779 = vsub.f32 %v235, %v778
    %v780 = vand.u32 %v779, 4294901760
    %v781 = vsub.f32 %v779, %v780
    %v782 = vand.u32 %v781, 4294901760
    %783 = vmatpush.msra.mxu0 %v782
    %v784 = vand.u32 %v717, 4294901760
    %785 = vmatmul.f32.gmra.mxu0 %v784
    %v786 = vpop.f32.mrf.mxu0
    %v787 = vadd.f32 %v746, %v786
    %788 = vdwg.mxu0
    %789 = vmatpush.msra.mxu0 0.0
    %790 = vmatpush.msra.mxu0 0.0
    %791 = vmatpush.msra.mxu0 0.0
    %792 = vmatpush.msra.mxu0 0.0
    %793 = vmatpush.msra.mxu0 0.0
    %794 = vmatpush.msra.mxu0 0.0
    %795 = vmatpush.msra.mxu0 0.0
    %796 = vmatpush.msra.mxu0 0.0
    %797 = vmatpush.msra.mxu0 0.0
    %798 = vmatpush.msra.mxu0 0.0
    %799 = vmatpush.msra.mxu0 0.0
    %800 = vmatpush.msra.mxu0 0.0
    %v801 = vand.u32 %v238, 4294901760
    %v802 = vsub.f32 %v238, %v801
    %803 = vmatpush.msra.mxu0 %v802
    %v804 = vand.u32 %v237, 4294901760
    %v805 = vsub.f32 %v237, %v804
    %806 = vmatpush.msra.mxu0 %v805
    %v807 = vand.u32 %v236, 4294901760
    %v808 = vsub.f32 %v236, %v807
    %809 = vmatpush.msra.mxu0 %v808
    %v810 = vand.u32 %v235, 4294901760
    %v811 = vsub.f32 %v235, %v810
    %812 = vmatpush.msra.mxu0 %v811
    %v813 = vand.u32 %v717, 4294901760
    %v814 = vsub.f32 %v717, %v813
    %815 = vmatmul.f32.gmra.mxu0 %v814
    %v816 = vpop.f32.mrf.mxu0
    %v817 = vadd.f32 %v787, %v816
    %818 = vdwg.mxu0
    %819 = vmatpush.msra.mxu0 0.0
    %820 = vmatpush.msra.mxu0 0.0
    %821 = vmatpush.msra.mxu0 0.0
    %822 = vmatpush.msra.mxu0 0.0
    %823 = vmatpush.msra.mxu0 0.0
    %824 = vmatpush.msra.mxu0 0.0
    %825 = vmatpush.msra.mxu0 0.0
    %826 = vmatpush.msra.mxu0 0.0
    %827 = vmatpush.msra.mxu0 0.0
    %828 = vmatpush.msra.mxu0 0.0
    %829 = vmatpush.msra.mxu0 0.0
    %830 = vmatpush.msra.mxu0 0.0
    %v831 = vand.u32 %v238, 4294901760
    %832 = vmatpush.msra.mxu0 %v831
    %v833 = vand.u32 %v237, 4294901760
    %834 = vmatpush.msra.mxu0 %v833
    %v835 = vand.u32 %v236, 4294901760
    %836 = vmatpush.msra.mxu0 %v835
    %v837 = vand.u32 %v235, 4294901760
    %838 = vmatpush.msra.mxu0 %v837
    %v839 = vand.u32 %v717, 4294901760
    %v840 = vsub.f32 %v717, %v839
    %v841 = vand.u32 %v840, 4294901760
    %842 = vmatmul.f32.gmra.mxu0 %v841
    %v843 = vpop.f32.mrf.mxu0
    %v844 = vadd.f32 %v817, %v843
    %845 = vdwg.mxu0
    %846 = vmatpush.msra.mxu0 0.0
    %847 = vmatpush.msra.mxu0 0.0
    %848 = vmatpush.msra.mxu0 0.0
    %849 = vmatpush.msra.mxu0 0.0
    %850 = vmatpush.msra.mxu0 0.0
    %851 = vmatpush.msra.mxu0 0.0
    %852 = vmatpush.msra.mxu0 0.0
    %853 = vmatpush.msra.mxu0 0.0
    %854 = vmatpush.msra.mxu0 0.0
    %855 = vmatpush.msra.mxu0 0.0
    %856 = vmatpush.msra.mxu0 0.0
    %857 = vmatpush.msra.mxu0 0.0
    %v858 = vand.u32 %v238, 4294901760
    %v859 = vsub.f32 %v238, %v858
    %v860 = vand.u32 %v859, 4294901760
    %861 = vmatpush.msra.mxu0 %v860
    %v862 = vand.u32 %v237, 4294901760
    %v863 = vsub.f32 %v237, %v862
    %v864 = vand.u32 %v863, 4294901760
    %865 = vmatpush.msra.mxu0 %v864
    %v866 = vand.u32 %v236, 4294901760
    %v867 = vsub.f32 %v236, %v866
    %v868 = vand.u32 %v867, 4294901760
    %869 = vmatpush.msra.mxu0 %v868
    %v870 = vand.u32 %v235, 4294901760
    %v871 = vsub.f32 %v235, %v870
    %v872 = vand.u32 %v871, 4294901760
    %873 = vmatpush.msra.mxu0 %v872
    %v874 = vand.u32 %v717, 4294901760
    %875 = vmatmul.f32.gmra.mxu0 %v874
    %v876 = vpop.f32.mrf.mxu0
    %v877 = vadd.f32 %v844, %v876
    %878 = vdwg.mxu0
    %879 = vmatpush.msra.mxu0 0.0
    %880 = vmatpush.msra.mxu0 0.0
    %881 = vmatpush.msra.mxu0 0.0
    %882 = vmatpush.msra.mxu0 0.0
    %883 = vmatpush.msra.mxu0 0.0
    %884 = vmatpush.msra.mxu0 0.0
    %885 = vmatpush.msra.mxu0 0.0
    %886 = vmatpush.msra.mxu0 0.0
    %887 = vmatpush.msra.mxu0 0.0
    %888 = vmatpush.msra.mxu0 0.0
    %889 = vmatpush.msra.mxu0 0.0
    %890 = vmatpush.msra.mxu0 0.0
    %v891 = vand.u32 %v238, 4294901760
    %892 = vmatpush.msra.mxu0 %v891
    %v893 = vand.u32 %v237, 4294901760
    %894 = vmatpush.msra.mxu0 %v893
    %v895 = vand.u32 %v236, 4294901760
    %896 = vmatpush.msra.mxu0 %v895
    %v897 = vand.u32 %v235, 4294901760
    %898 = vmatpush.msra.mxu0 %v897
    %v899 = vand.u32 %v717, 4294901760
    %900 = vmatmul.f32.gmra.mxu0 %v899
    %v901 = vpop.f32.mrf.mxu0
    %v902 = vadd.f32 %v877, %v901
    %903 = vdwg.mxu0
    %v905 = vrot.slane %v902, 4
    %v907 = vadd.f32 %v229, %v905
    %v908 = vxor.u32 %v907, 2147483648
    %v909 = vmul.f32 %v908, 1.442695
    %v910 = vpow.pop %v909
    %v911 = vadd.f32 %v910, 1.0
    %v912 = vrcp.pop %v911
    %v913 = vmul.f32 %v911, %v912
    %v914 = vsub.f32 1.0, %v913
    %v915 = vmul.f32 %v912, %v914
    %v916 = vadd.f32 %v912, %v915
    %vm917 = vweird.f32 %v911
    %vm918 = vweird.f32 %v912
    %vm919 = vmor %vm917, %vm918
    %v920 = vsel %vm919, %v912, %v916
    %v921 = vand.u32 2147483647, %v911
    %vm922 = vcmp.eq.f32.partialorder %v921, 8.507059e+37
    %v923 = vand.u32 %v911, 2147483648
    %v924 = vor.u32 1.1754944e-38, %v923
    %v925 = vsel %vm922, %v924, %v920
    %v926 = vmul.f32 1.0, %v925
    %v927 = vtanh.pop %v907
    %v928 = vsel %vm245, %v927, %v926
    %v930 = vrot.slane %v706, 6
    %v932 = vmul.f32 %v928, %v930
    %934 = vrot.lane.b32.xlu0 %v928, 64
    %v935 = vpop.permute.xlu0 %934
    %v937 = vmul.f32 %v928, %v935
    %939 = vrot.lane.b32.xlu0 %v937, 32
    %v940 = vpop.permute.xlu0 %939
    %v942 = vadd.f32 %v932, %v940
    %v943 = vtanh.pop %v942
    %945 = vrot.lane.b32.xlu0 %v943, 64
    %v946 = vpop.permute.xlu0 %945
    %v948 = vmul.f32 %v928, %v946
    %v950 = vrot.slane %v948, 4
    %951 = vrot.lane.b32.xlu0 %v950, 32
    %v952 = vpop.permute.xlu0 %951
    %v953 = vsel %vm246, %v952, 0
    %955 = vmatpush.msra.mxu0 0.0
    %956 = vmatpush.msra.mxu0 0.0
    %957 = vmatpush.msra.mxu0 0.0
    %958 = vmatpush.msra.mxu0 0.0
    %959 = vmatpush.msra.mxu0 0.0
    %960 = vmatpush.msra.mxu0 0.0
    %961 = vmatpush.msra.mxu0 0.0
    %962 = vmatpush.msra.mxu0 0.0
    %963 = vmatpush.msra.mxu0 0.0
    %964 = vmatpush.msra.mxu0 0.0
    %965 = vmatpush.msra.mxu0 0.0
    %966 = vmatpush.msra.mxu0 0.0
    %v967 = vand.u32 %v238, 4294901760
    %968 = vmatpush.msra.mxu0 %v967
    %v969 = vand.u32 %v237, 4294901760
    %970 = vmatpush.msra.mxu0 %v969
    %v971 = vand.u32 %v236, 4294901760
    %972 = vmatpush.msra.mxu0 %v971
    %v973 = vand.u32 %v235, 4294901760
    %974 = vmatpush.msra.mxu0 %v973
    %v975 = vand.u32 %v953, 4294901760
    %v976 = vsub.f32 %v953, %v975
    %v977 = vand.u32 %v976, 4294901760
    %v978 = vsub.f32 %v976, %v977
    %v979 = vand.u32 %v978, 4294901760
    %980 = vmatmul.f32.gmra.mxu0 %v979
    %v981 = vpop.f32.mrf.mxu0
    %v982 = vadd.f32 0.0, %v981
    %983 = vdwg.mxu0
    %984 = vmatpush.msra.mxu0 0.0
    %985 = vmatpush.msra.mxu0 0.0
    %986 = vmatpush.msra.mxu0 0.0
    %987 = vmatpush.msra.mxu0 0.0
    %988 = vmatpush.msra.mxu0 0.0
    %989 = vmatpush.msra.mxu0 0.0
    %990 = vmatpush.msra.mxu0 0.0
    %991 = vmatpush.msra.mxu0 0.0
    %992 = vmatpush.msra.mxu0 0.0
    %993 = vmatpush.msra.mxu0 0.0
    %994 = vmatpush.msra.mxu0 0.0
    %995 = vmatpush.msra.mxu0 0.0
    %v996 = vand.u32 %v238, 4294901760
    %v997 = vsub.f32 %v238, %v996
    %v998 = vand.u32 %v997, 4294901760
    %v999 = vsub.f32 %v997, %v998
    %v1000 = vand.u32 %v999, 4294901760
    %1001 = vmatpush.msra.mxu0 %v1000
    %v1002 = vand.u32 %v237, 4294901760
    %v1003 = vsub.f32 %v237, %v1002
    %v1004 = vand.u32 %v1003, 4294901760
    %v1005 = vsub.f32 %v1003, %v1004
    %v1006 = vand.u32 %v1005, 4294901760
    %1007 = vmatpush.msra.mxu0 %v1006
    %v1008 = vand.u32 %v236, 4294901760
    %v1009 = vsub.f32 %v236, %v1008
    %v1010 = vand.u32 %v1009, 4294901760
    %v1011 = vsub.f32 %v1009, %v1010
    %v1012 = vand.u32 %v1011, 4294901760
    %1013 = vmatpush.msra.mxu0 %v1012
    %v1014 = vand.u32 %v235, 4294901760
    %v1015 = vsub.f32 %v235, %v1014
    %v1016 = vand.u32 %v1015, 4294901760
    %v1017 = vsub.f32 %v1015, %v1016
    %v1018 = vand.u32 %v1017, 4294901760
    %1019 = vmatpush.msra.mxu0 %v1018
    %v1020 = vand.u32 %v953, 4294901760
    %1021 = vmatmul.f32.gmra.mxu0 %v1020
    %v1022 = vpop.f32.mrf.mxu0
    %v1023 = vadd.f32 %v982, %v1022
    %1024 = vdwg.mxu0
    %1025 = vmatpush.msra.mxu0 0.0
    %1026 = vmatpush.msra.mxu0 0.0
    %1027 = vmatpush.msra.mxu0 0.0
    %1028 = vmatpush.msra.mxu0 0.0
    %1029 = vmatpush.msra.mxu0 0.0
    %1030 = vmatpush.msra.mxu0 0.0
    %1031 = vmatpush.msra.mxu0 0.0
    %1032 = vmatpush.msra.mxu0 0.0
    %1033 = vmatpush.msra.mxu0 0.0
    %1034 = vmatpush.msra.mxu0 0.0
    %1035 = vmatpush.msra.mxu0 0.0
    %1036 = vmatpush.msra.mxu0 0.0
    %v1037 = vand.u32 %v238, 4294901760
    %v1038 = vsub.f32 %v238, %v1037
    %1039 = vmatpush.msra.mxu0 %v1038
    %v1040 = vand.u32 %v237, 4294901760
    %v1041 = vsub.f32 %v237, %v1040
    %1042 = vmatpush.msra.mxu0 %v1041
    %v1043 = vand.u32 %v236, 4294901760
    %v1044 = vsub.f32 %v236, %v1043
    %1045 = vmatpush.msra.mxu0 %v1044
    %v1046 = vand.u32 %v235, 4294901760
    %v1047 = vsub.f32 %v235, %v1046
    %1048 = vmatpush.msra.mxu0 %v1047
    %v1049 = vand.u32 %v953, 4294901760
    %v1050 = vsub.f32 %v953, %v1049
    %1051 = vmatmul.f32.gmra.mxu0 %v1050
    %v1052 = vpop.f32.mrf.mxu0
    %v1053 = vadd.f32 %v1023, %v1052
    %1054 = vdwg.mxu0
    %1055 = vmatpush.msra.mxu0 0.0
    %1056 = vmatpush.msra.mxu0 0.0
    %1057 = vmatpush.msra.mxu0 0.0
    %1058 = vmatpush.msra.mxu0 0.0
    %1059 = vmatpush.msra.mxu0 0.0
    %1060 = vmatpush.msra.mxu0 0.0
    %1061 = vmatpush.msra.mxu0 0.0
    %1062 = vmatpush.msra.mxu0 0.0
    %1063 = vmatpush.msra.mxu0 0.0
    %1064 = vmatpush.msra.mxu0 0.0
    %1065 = vmatpush.msra.mxu0 0.0
    %1066 = vmatpush.msra.mxu0 0.0
    %v1067 = vand.u32 %v238, 4294901760
    %1068 = vmatpush.msra.mxu0 %v1067
    %v1069 = vand.u32 %v237, 4294901760
    %1070 = vmatpush.msra.mxu0 %v1069
    %v1071 = vand.u32 %v236, 4294901760
    %1072 = vmatpush.msra.mxu0 %v1071
    %v1073 = vand.u32 %v235, 4294901760
    %1074 = vmatpush.msra.mxu0 %v1073
    %v1075 = vand.u32 %v953, 4294901760
    %v1076 = vsub.f32 %v953, %v1075
    %v1077 = vand.u32 %v1076, 4294901760
    %1078 = vmatmul.f32.gmra.mxu0 %v1077
    %v1079 = vpop.f32.mrf.mxu0
    %v1080 = vadd.f32 %v1053, %v1079
    %1081 = vdwg.mxu0
    %1082 = vmatpush.msra.mxu0 0.0
    %1083 = vmatpush.msra.mxu0 0.0
    %1084 = vmatpush.msra.mxu0 0.0
    %1085 = vmatpush.msra.mxu0 0.0
    %1086 = vmatpush.msra.mxu0 0.0
    %1087 = vmatpush.msra.mxu0 0.0
    %1088 = vmatpush.msra.mxu0 0.0
    %1089 = vmatpush.msra.mxu0 0.0
    %1090 = vmatpush.msra.mxu0 0.0
    %1091 = vmatpush.msra.mxu0 0.0
    %1092 = vmatpush.msra.mxu0 0.0
    %1093 = vmatpush.msra.mxu0 0.0
    %v1094 = vand.u32 %v238, 4294901760
    %v1095 = vsub.f32 %v238, %v1094
    %v1096 = vand.u32 %v1095, 4294901760
    %1097 = vmatpush.msra.mxu0 %v1096
    %v1098 = vand.u32 %v237, 4294901760
    %v1099 = vsub.f32 %v237, %v1098
    %v1100 = vand.u32 %v1099, 4294901760
    %1101 = vmatpush.msra.mxu0 %v1100
    %v1102 = vand.u32 %v236, 4294901760
    %v1103 = vsub.f32 %v236, %v1102
    %v1104 = vand.u32 %v1103, 4294901760
    %1105 = vmatpush.msra.mxu0 %v1104
    %v1106 = vand.u32 %v235, 4294901760
    %v1107 = vsub.f32 %v235, %v1106
    %v1108 = vand.u32 %v1107, 4294901760
    %1109 = vmatpush.msra.mxu0 %v1108
    %v1110 = vand.u32 %v953, 4294901760
    %1111 = vmatmul.f32.gmra.mxu0 %v1110
    %v1112 = vpop.f32.mrf.mxu0
    %v1113 = vadd.f32 %v1080, %v1112
    %1114 = vdwg.mxu0
    %1115 = vmatpush.msra.mxu0 0.0
    %1116 = vmatpush.msra.mxu0 0.0
    %1117 = vmatpush.msra.mxu0 0.0
    %1118 = vmatpush.msra.mxu0 0.0
    %1119 = vmatpush.msra.mxu0 0.0
    %1120 = vmatpush.msra.mxu0 0.0
    %1121 = vmatpush.msra.mxu0 0.0
    %1122 = vmatpush.msra.mxu0 0.0
    %1123 = vmatpush.msra.mxu0 0.0
    %1124 = vmatpush.msra.mxu0 0.0
    %1125 = vmatpush.msra.mxu0 0.0
    %1126 = vmatpush.msra.mxu0 0.0
    %v1127 = vand.u32 %v238, 4294901760
    %1128 = vmatpush.msra.mxu0 %v1127
    %v1129 = vand.u32 %v237, 4294901760
    %1130 = vmatpush.msra.mxu0 %v1129
    %v1131 = vand.u32 %v236, 4294901760
    %1132 = vmatpush.msra.mxu0 %v1131
    %v1133 = vand.u32 %v235, 4294901760
    %1134 = vmatpush.msra.mxu0 %v1133
    %v1135 = vand.u32 %v953, 4294901760
    %1136 = vmatmul.f32.gmra.mxu0 %v1135
    %v1137 = vpop.f32.mrf.mxu0
    %v1138 = vadd.f32 %v1113, %v1137
    %1139 = vdwg.mxu0
    %v1141 = vrot.slane %v1138, 2
    %v1143 = vadd.f32 %v229, %v1141
    %v1144 = vxor.u32 %v1143, 2147483648
    %v1145 = vmul.f32 %v1144, 1.442695
    %v1146 = vpow.pop %v1145
    %v1147 = vadd.f32 %v1146, 1.0
    %v1148 = vrcp.pop %v1147
    %v1149 = vmul.f32 %v1147, %v1148
    %v1150 = vsub.f32 1.0, %v1149
    %v1151 = vmul.f32 %v1148, %v1150
    %v1152 = vadd.f32 %v1148, %v1151
    %vm1153 = vweird.f32 %v1147
    %vm1154 = vweird.f32 %v1148
    %vm1155 = vmor %vm1153, %vm1154
    %v1156 = vsel %vm1155, %v1148, %v1152
    %v1157 = vand.u32 2147483647, %v1147
    %vm1158 = vcmp.eq.f32.partialorder %v1157, 8.507059e+37
    %v1159 = vand.u32 %v1147, 2147483648
    %v1160 = vor.u32 1.1754944e-38, %v1159
    %v1161 = vsel %vm1158, %v1160, %v1156
    %v1162 = vmul.f32 1.0, %v1161
    %v1163 = vtanh.pop %v1143
    %v1164 = vsel %vm245, %v1163, %v1162
    %v1166 = vrot.slane %v942, 6
    %v1168 = vmul.f32 %v1164, %v1166
    %1170 = vrot.lane.b32.xlu0 %v1164, 64
    %v1171 = vpop.permute.xlu0 %1170
    %v1173 = vmul.f32 %v1164, %v1171
    %1175 = vrot.lane.b32.xlu0 %v1173, 32
    %v1176 = vpop.permute.xlu0 %1175
    %v1178 = vadd.f32 %v1168, %v1176
    %v1179 = vtanh.pop %v1178
    %1181 = vrot.lane.b32.xlu0 %v1179, 64
    %v1182 = vpop.permute.xlu0 %1181
    %v1184 = vmul.f32 %v1164, %v1182
    %v1186 = vrot.slane %v1184, 6
    %1187 = vrot.lane.b32.xlu0 %v1186, 32
    %v1188 = vpop.permute.xlu0 %1187
    %v1189 = vsel %vm246, %v1188, 0
    %1191 = vmatpush.msra.mxu0 0.0
    %1192 = vmatpush.msra.mxu0 0.0
    %1193 = vmatpush.msra.mxu0 0.0
    %1194 = vmatpush.msra.mxu0 0.0
    %1195 = vmatpush.msra.mxu0 0.0
    %1196 = vmatpush.msra.mxu0 0.0
    %1197 = vmatpush.msra.mxu0 0.0
    %1198 = vmatpush.msra.mxu0 0.0
    %1199 = vmatpush.msra.mxu0 0.0
    %1200 = vmatpush.msra.mxu0 0.0
    %1201 = vmatpush.msra.mxu0 0.0
    %1202 = vmatpush.msra.mxu0 0.0
    %v1203 = vand.u32 %v238, 4294901760
    %1204 = vmatpush.msra.mxu0 %v1203
    %v1205 = vand.u32 %v237, 4294901760
    %1206 = vmatpush.msra.mxu0 %v1205
    %v1207 = vand.u32 %v236, 4294901760
    %1208 = vmatpush.msra.mxu0 %v1207
    %v1209 = vand.u32 %v235, 4294901760
    %1210 = vmatpush.msra.mxu0 %v1209
    %v1211 = vand.u32 %v1189, 4294901760
    %v1212 = vsub.f32 %v1189, %v1211
    %v1213 = vand.u32 %v1212, 4294901760
    %v1214 = vsub.f32 %v1212, %v1213
    %v1215 = vand.u32 %v1214, 4294901760
    %1216 = vmatmul.f32.gmra.mxu0 %v1215
    %v1217 = vpop.f32.mrf.mxu0
    %v1218 = vadd.f32 0.0, %v1217
    %1219 = vdwg.mxu0
    %1220 = vmatpush.msra.mxu0 0.0
    %1221 = vmatpush.msra.mxu0 0.0
    %1222 = vmatpush.msra.mxu0 0.0
    %1223 = vmatpush.msra.mxu0 0.0
    %1224 = vmatpush.msra.mxu0 0.0
    %1225 = vmatpush.msra.mxu0 0.0
    %1226 = vmatpush.msra.mxu0 0.0
    %1227 = vmatpush.msra.mxu0 0.0
    %1228 = vmatpush.msra.mxu0 0.0
    %1229 = vmatpush.msra.mxu0 0.0
    %1230 = vmatpush.msra.mxu0 0.0
    %1231 = vmatpush.msra.mxu0 0.0
    %v1232 = vand.u32 %v238, 4294901760
    %v1233 = vsub.f32 %v238, %v1232
    %v1234 = vand.u32 %v1233, 4294901760
    %v1235 = vsub.f32 %v1233, %v1234
    %v1236 = vand.u32 %v1235, 4294901760
    %1237 = vmatpush.msra.mxu0 %v1236
    %v1238 = vand.u32 %v237, 4294901760
    %v1239 = vsub.f32 %v237, %v1238
    %v1240 = vand.u32 %v1239, 4294901760
    %v1241 = vsub.f32 %v1239, %v1240
    %v1242 = vand.u32 %v1241, 4294901760
    %1243 = vmatpush.msra.mxu0 %v1242
    %v1244 = vand.u32 %v236, 4294901760
    %v1245 = vsub.f32 %v236, %v1244
    %v1246 = vand.u32 %v1245, 4294901760
    %v1247 = vsub.f32 %v1245, %v1246
    %v1248 = vand.u32 %v1247, 4294901760
    %1249 = vmatpush.msra.mxu0 %v1248
    %v1250 = vand.u32 %v235, 4294901760
    %v1251 = vsub.f32 %v235, %v1250
    %v1252 = vand.u32 %v1251, 4294901760
    %v1253 = vsub.f32 %v1251, %v1252
    %v1254 = vand.u32 %v1253, 4294901760
    %1255 = vmatpush.msra.mxu0 %v1254
    %v1256 = vand.u32 %v1189, 4294901760
    %1257 = vmatmul.f32.gmra.mxu0 %v1256
    %v1258 = vpop.f32.mrf.mxu0
    %v1259 = vadd.f32 %v1218, %v1258
    %1260 = vdwg.mxu0
    %1261 = vmatpush.msra.mxu0 0.0
    %1262 = vmatpush.msra.mxu0 0.0
    %1263 = vmatpush.msra.mxu0 0.0
    %1264 = vmatpush.msra.mxu0 0.0
    %1265 = vmatpush.msra.mxu0 0.0
    %1266 = vmatpush.msra.mxu0 0.0
    %1267 = vmatpush.msra.mxu0 0.0
    %1268 = vmatpush.msra.mxu0 0.0
    %1269 = vmatpush.msra.mxu0 0.0
    %1270 = vmatpush.msra.mxu0 0.0
    %1271 = vmatpush.msra.mxu0 0.0
    %1272 = vmatpush.msra.mxu0 0.0
    %v1273 = vand.u32 %v238, 4294901760
    %v1274 = vsub.f32 %v238, %v1273
    %1275 = vmatpush.msra.mxu0 %v1274
    %v1276 = vand.u32 %v237, 4294901760
    %v1277 = vsub.f32 %v237, %v1276
    %1278 = vmatpush.msra.mxu0 %v1277
    %v1279 = vand.u32 %v236, 4294901760
    %v1280 = vsub.f32 %v236, %v1279
    %1281 = vmatpush.msra.mxu0 %v1280
    %v1282 = vand.u32 %v235, 4294901760
    %v1283 = vsub.f32 %v235, %v1282
    %1284 = vmatpush.msra.mxu0 %v1283
    %v1285 = vand.u32 %v1189, 4294901760
    %v1286 = vsub.f32 %v1189, %v1285
    %1287 = vmatmul.f32.gmra.mxu0 %v1286
    %v1288 = vpop.f32.mrf.mxu0
    %v1289 = vadd.f32 %v1259, %v1288
    %1290 = vdwg.mxu0
    %1291 = vmatpush.msra.mxu0 0.0
    %1292 = vmatpush.msra.mxu0 0.0
    %1293 = vmatpush.msra.mxu0 0.0
    %1294 = vmatpush.msra.mxu0 0.0
    %1295 = vmatpush.msra.mxu0 0.0
    %1296 = vmatpush.msra.mxu0 0.0
    %1297 = vmatpush.msra.mxu0 0.0
    %1298 = vmatpush.msra.mxu0 0.0
    %1299 = vmatpush.msra.mxu0 0.0
    %1300 = vmatpush.msra.mxu0 0.0
    %1301 = vmatpush.msra.mxu0 0.0
    %1302 = vmatpush.msra.mxu0 0.0
    %v1303 = vand.u32 %v238, 4294901760
    %1304 = vmatpush.msra.mxu0 %v1303
    %v1305 = vand.u32 %v237, 4294901760
    %1306 = vmatpush.msra.mxu0 %v1305
    %v1307 = vand.u32 %v236, 4294901760
    %1308 = vmatpush.msra.mxu0 %v1307
    %v1309 = vand.u32 %v235, 4294901760
    %1310 = vmatpush.msra.mxu0 %v1309
    %v1311 = vand.u32 %v1189, 4294901760
    %v1312 = vsub.f32 %v1189, %v1311
    %v1313 = vand.u32 %v1312, 4294901760
    %1314 = vmatmul.f32.gmra.mxu0 %v1313
    %v1315 = vpop.f32.mrf.mxu0
    %v1316 = vadd.f32 %v1289, %v1315
    %1317 = vdwg.mxu0
    %1318 = vmatpush.msra.mxu0 0.0
    %1319 = vmatpush.msra.mxu0 0.0
    %1320 = vmatpush.msra.mxu0 0.0
    %1321 = vmatpush.msra.mxu0 0.0
    %1322 = vmatpush.msra.mxu0 0.0
    %1323 = vmatpush.msra.mxu0 0.0
    %1324 = vmatpush.msra.mxu0 0.0
    %1325 = vmatpush.msra.mxu0 0.0
    %1326 = vmatpush.msra.mxu0 0.0
    %1327 = vmatpush.msra.mxu0 0.0
    %1328 = vmatpush.msra.mxu0 0.0
    %1329 = vmatpush.msra.mxu0 0.0
    %v1330 = vand.u32 %v238, 4294901760
    %v1331 = vsub.f32 %v238, %v1330
    %v1332 = vand.u32 %v1331, 4294901760
    %1333 = vmatpush.msra.mxu0 %v1332
    %v1334 = vand.u32 %v237, 4294901760
    %v1335 = vsub.f32 %v237, %v1334
    %v1336 = vand.u32 %v1335, 4294901760
    %1337 = vmatpush.msra.mxu0 %v1336
    %v1338 = vand.u32 %v236, 4294901760
    %v1339 = vsub.f32 %v236, %v1338
    %v1340 = vand.u32 %v1339, 4294901760
    %1341 = vmatpush.msra.mxu0 %v1340
    %v1342 = vand.u32 %v235, 4294901760
    %v1343 = vsub.f32 %v235, %v1342
    %v1344 = vand.u32 %v1343, 4294901760
    %1345 = vmatpush.msra.mxu0 %v1344
    %v1346 = vand.u32 %v1189, 4294901760
    %1347 = vmatmul.f32.gmra.mxu0 %v1346
    %v1348 = vpop.f32.mrf.mxu0
    %v1349 = vadd.f32 %v1316, %v1348
    %1350 = vdwg.mxu0
    %1351 = vmatpush.msra.mxu0 0.0
    %1352 = vmatpush.msra.mxu0 0.0
    %1353 = vmatpush.msra.mxu0 0.0
    %1354 = vmatpush.msra.mxu0 0.0
    %1355 = vmatpush.msra.mxu0 0.0
    %1356 = vmatpush.msra.mxu0 0.0
    %1357 = vmatpush.msra.mxu0 0.0
    %1358 = vmatpush.msra.mxu0 0.0
    %1359 = vmatpush.msra.mxu0 0.0
    %1360 = vmatpush.msra.mxu0 0.0
    %1361 = vmatpush.msra.mxu0 0.0
    %1362 = vmatpush.msra.mxu0 0.0
    %v1363 = vand.u32 %v238, 4294901760
    %1364 = vmatpush.msra.mxu0 %v1363
    %v1365 = vand.u32 %v237, 4294901760
    %1366 = vmatpush.msra.mxu0 %v1365
    %v1367 = vand.u32 %v236, 4294901760
    %1368 = vmatpush.msra.mxu0 %v1367
    %v1369 = vand.u32 %v235, 4294901760
    %1370 = vmatpush.msra.mxu0 %v1369
    %v1371 = vand.u32 %v1189, 4294901760
    %1372 = vmatmul.f32.gmra.mxu0 %v1371
    %v1373 = vpop.f32.mrf.mxu0
    %v1374 = vadd.f32 %v1349, %v1373
    %1375 = vdwg.mxu0
    %v1376 = vadd.f32 %v233, %v1374
    %v1377 = vxor.u32 %v1376, 2147483648
    %v1378 = vmul.f32 %v1377, 1.442695
    %v1379 = vpow.pop %v1378
    %v1380 = vadd.f32 %v1379, 1.0
    %v1381 = vrcp.pop %v1380
    %v1382 = vmul.f32 %v1380, %v1381
    %v1383 = vsub.f32 1.0, %v1382
    %v1384 = vmul.f32 %v1381, %v1383
    %v1385 = vadd.f32 %v1381, %v1384
    %vm1386 = vweird.f32 %v1380
    %vm1387 = vweird.f32 %v1381
    %vm1388 = vmor %vm1386, %vm1387
    %v1389 = vsel %vm1388, %v1381, %v1385
    %v1390 = vand.u32 2147483647, %v1380
    %vm1391 = vcmp.eq.f32.partialorder %v1390, 8.507059e+37
    %v1392 = vand.u32 %v1380, 2147483648
    %v1393 = vor.u32 1.1754944e-38, %v1392
    %v1394 = vsel %vm1391, %v1393, %v1389
    %v1395 = vmul.f32 1.0, %v1394
    %v1396 = vtanh.pop %v1376
    %v1397 = vsel %vm245, %v1396, %v1395
    %v1399 = vrot.slane %v1178, 6
    %v1401 = vmul.f32 %v1397, %v1399
    %1403 = vrot.lane.b32.xlu0 %v1397, 64
    %v1404 = vpop.permute.xlu0 %1403
    %v1406 = vmul.f32 %v1397, %v1404
    %1408 = vrot.lane.b32.xlu0 %v1406, 32
    %v1409 = vpop.permute.xlu0 %1408
    %v1411 = vadd.f32 %v1401, %v1409
    %v1412 = vtanh.pop %v1411
    %1414 = vrot.lane.b32.xlu0 %v1412, 64
    %v1415 = vpop.permute.xlu0 %1414
    %v1417 = vmul.f32 %v1397, %v1415
    %1419 = vrot.lane.b32.xlu0 %v1417, 32
    %v1420 = vpop.permute.xlu0 %1419
    %v1421 = vsel %vm246, %v1420, 0
    %1423 = vmatpush.msra.mxu0 0.0
    %1424 = vmatpush.msra.mxu0 0.0
    %1425 = vmatpush.msra.mxu0 0.0
    %1426 = vmatpush.msra.mxu0 0.0
    %1427 = vmatpush.msra.mxu0 0.0
    %1428 = vmatpush.msra.mxu0 0.0
    %1429 = vmatpush.msra.mxu0 0.0
    %1430 = vmatpush.msra.mxu0 0.0
    %1431 = vmatpush.msra.mxu0 0.0
    %1432 = vmatpush.msra.mxu0 0.0
    %1433 = vmatpush.msra.mxu0 0.0
    %1434 = vmatpush.msra.mxu0 0.0
    %v1435 = vand.u32 %v238, 4294901760
    %1436 = vmatpush.msra.mxu0 %v1435
    %v1437 = vand.u32 %v237, 4294901760
    %1438 = vmatpush.msra.mxu0 %v1437
    %v1439 = vand.u32 %v236, 4294901760
    %1440 = vmatpush.msra.mxu0 %v1439
    %v1441 = vand.u32 %v235, 4294901760
    %1442 = vmatpush.msra.mxu0 %v1441
    %v1443 = vand.u32 %v1421, 4294901760
    %v1444 = vsub.f32 %v1421, %v1443
    %v1445 = vand.u32 %v1444, 4294901760
    %v1446 = vsub.f32 %v1444, %v1445
    %v1447 = vand.u32 %v1446, 4294901760
    %1448 = vmatmul.f32.gmra.mxu0 %v1447
    %v1449 = vpop.f32.mrf.mxu0
    %v1450 = vadd.f32 0.0, %v1449
    %1451 = vdwg.mxu0
    %1452 = vmatpush.msra.mxu0 0.0
    %1453 = vmatpush.msra.mxu0 0.0
    %1454 = vmatpush.msra.mxu0 0.0
    %1455 = vmatpush.msra.mxu0 0.0
    %1456 = vmatpush.msra.mxu0 0.0
    %1457 = vmatpush.msra.mxu0 0.0
    %1458 = vmatpush.msra.mxu0 0.0
    %1459 = vmatpush.msra.mxu0 0.0
    %1460 = vmatpush.msra.mxu0 0.0
    %1461 = vmatpush.msra.mxu0 0.0
    %1462 = vmatpush.msra.mxu0 0.0
    %1463 = vmatpush.msra.mxu0 0.0
    %v1464 = vand.u32 %v238, 4294901760
    %v1465 = vsub.f32 %v238, %v1464
    %v1466 = vand.u32 %v1465, 4294901760
    %v1467 = vsub.f32 %v1465, %v1466
    %v1468 = vand.u32 %v1467, 4294901760
    %1469 = vmatpush.msra.mxu0 %v1468
    %v1470 = vand.u32 %v237, 4294901760
    %v1471 = vsub.f32 %v237, %v1470
    %v1472 = vand.u32 %v1471, 4294901760
    %v1473 = vsub.f32 %v1471, %v1472
    %v1474 = vand.u32 %v1473, 4294901760
    %1475 = vmatpush.msra.mxu0 %v1474
    %v1476 = vand.u32 %v236, 4294901760
    %v1477 = vsub.f32 %v236, %v1476
    %v1478 = vand.u32 %v1477, 4294901760
    %v1479 = vsub.f32 %v1477, %v1478
    %v1480 = vand.u32 %v1479, 4294901760
    %1481 = vmatpush.msra.mxu0 %v1480
    %v1482 = vand.u32 %v235, 4294901760
    %v1483 = vsub.f32 %v235, %v1482
    %v1484 = vand.u32 %v1483, 4294901760
    %v1485 = vsub.f32 %v1483, %v1484
    %v1486 = vand.u32 %v1485, 4294901760
    %1487 = vmatpush.msra.mxu0 %v1486
    %v1488 = vand.u32 %v1421, 4294901760
    %1489 = vmatmul.f32.gmra.mxu0 %v1488
    %v1490 = vpop.f32.mrf.mxu0
    %v1491 = vadd.f32 %v1450, %v1490
    %1492 = vdwg.mxu0
    %1493 = vmatpush.msra.mxu0 0.0
    %1494 = vmatpush.msra.mxu0 0.0
    %1495 = vmatpush.msra.mxu0 0.0
    %1496 = vmatpush.msra.mxu0 0.0
    %1497 = vmatpush.msra.mxu0 0.0
    %1498 = vmatpush.msra.mxu0 0.0
    %1499 = vmatpush.msra.mxu0 0.0
    %1500 = vmatpush.msra.mxu0 0.0
    %1501 = vmatpush.msra.mxu0 0.0
    %1502 = vmatpush.msra.mxu0 0.0
    %1503 = vmatpush.msra.mxu0 0.0
    %1504 = vmatpush.msra.mxu0 0.0
    %v1505 = vand.u32 %v238, 4294901760
    %v1506 = vsub.f32 %v238, %v1505
    %1507 = vmatpush.msra.mxu0 %v1506
    %v1508 = vand.u32 %v237, 4294901760
    %v1509 = vsub.f32 %v237, %v1508
    %1510 = vmatpush.msra.mxu0 %v1509
    %v1511 = vand.u32 %v236, 4294901760
    %v1512 = vsub.f32 %v236, %v1511
    %1513 = vmatpush.msra.mxu0 %v1512
    %v1514 = vand.u32 %v235, 4294901760
    %v1515 = vsub.f32 %v235, %v1514
    %1516 = vmatpush.msra.mxu0 %v1515
    %v1517 = vand.u32 %v1421, 4294901760
    %v1518 = vsub.f32 %v1421, %v1517
    %1519 = vmatmul.f32.gmra.mxu0 %v1518
    %v1520 = vpop.f32.mrf.mxu0
    %v1521 = vadd.f32 %v1491, %v1520
    %1522 = vdwg.mxu0
    %1523 = vmatpush.msra.mxu0 0.0
    %1524 = vmatpush.msra.mxu0 0.0
    %1525 = vmatpush.msra.mxu0 0.0
    %1526 = vmatpush.msra.mxu0 0.0
    %1527 = vmatpush.msra.mxu0 0.0
    %1528 = vmatpush.msra.mxu0 0.0
    %1529 = vmatpush.msra.mxu0 0.0
    %1530 = vmatpush.msra.mxu0 0.0
    %1531 = vmatpush.msra.mxu0 0.0
    %1532 = vmatpush.msra.mxu0 0.0
    %1533 = vmatpush.msra.mxu0 0.0
    %1534 = vmatpush.msra.mxu0 0.0
    %v1535 = vand.u32 %v238, 4294901760
    %1536 = vmatpush.msra.mxu0 %v1535
    %v1537 = vand.u32 %v237, 4294901760
    %1538 = vmatpush.msra.mxu0 %v1537
    %v1539 = vand.u32 %v236, 4294901760
    %1540 = vmatpush.msra.mxu0 %v1539
    %v1541 = vand.u32 %v235, 4294901760
    %1542 = vmatpush.msra.mxu0 %v1541
    %v1543 = vand.u32 %v1421, 4294901760
    %v1544 = vsub.f32 %v1421, %v1543
    %v1545 = vand.u32 %v1544, 4294901760
    %1546 = vmatmul.f32.gmra.mxu0 %v1545
    %v1547 = vpop.f32.mrf.mxu0
    %v1548 = vadd.f32 %v1521, %v1547
    %1549 = vdwg.mxu0
    %1550 = vmatpush.msra.mxu0 0.0
    %1551 = vmatpush.msra.mxu0 0.0
    %1552 = vmatpush.msra.mxu0 0.0
    %1553 = vmatpush.msra.mxu0 0.0
    %1554 = vmatpush.msra.mxu0 0.0
    %1555 = vmatpush.msra.mxu0 0.0
    %1556 = vmatpush.msra.mxu0 0.0
    %1557 = vmatpush.msra.mxu0 0.0
    %1558 = vmatpush.msra.mxu0 0.0
    %1559 = vmatpush.msra.mxu0 0.0
    %1560 = vmatpush.msra.mxu0 0.0
    %1561 = vmatpush.msra.mxu0 0.0
    %v1562 = vand.u32 %v238, 4294901760
    %v1563 = vsub.f32 %v238, %v1562
    %v1564 = vand.u32 %v1563, 4294901760
    %1565 = vmatpush.msra.mxu0 %v1564
    %v1566 = vand.u32 %v237, 4294901760
    %v1567 = vsub.f32 %v237, %v1566
    %v1568 = vand.u32 %v1567, 4294901760
    %1569 = vmatpush.msra.mxu0 %v1568
    %v1570 = vand.u32 %v236, 4294901760
    %v1571 = vsub.f32 %v236, %v1570
    %v1572 = vand.u32 %v1571, 4294901760
    %1573 = vmatpush.msra.mxu0 %v1572
    %v1574 = vand.u32 %v235, 4294901760
    %v1575 = vsub.f32 %v235, %v1574
    %v1576 = vand.u32 %v1575, 4294901760
    %1577 = vmatpush.msra.mxu0 %v1576
    %v1578 = vand.u32 %v1421, 4294901760
    %1579 = vmatmul.f32.gmra.mxu0 %v1578
    %v1580 = vpop.f32.mrf.mxu0
    %v1581 = vadd.f32 %v1548, %v1580
    %1582 = vdwg.mxu0
    %1583 = vmatpush.msra.mxu0 0.0
    %1584 = vmatpush.msra.mxu0 0.0
    %1585 = vmatpush.msra.mxu0 0.0
    %1586 = vmatpush.msra.mxu0 0.0
    %1587 = vmatpush.msra.mxu0 0.0
    %1588 = vmatpush.msra.mxu0 0.0
    %1589 = vmatpush.msra.mxu0 0.0
    %1590 = vmatpush.msra.mxu0 0.0
    %1591 = vmatpush.msra.mxu0 0.0
    %1592 = vmatpush.msra.mxu0 0.0
    %1593 = vmatpush.msra.mxu0 0.0
    %1594 = vmatpush.msra.mxu0 0.0
    %v1595 = vand.u32 %v238, 4294901760
    %1596 = vmatpush.msra.mxu0 %v1595
    %v1597 = vand.u32 %v237, 4294901760
    %1598 = vmatpush.msra.mxu0 %v1597
    %v1599 = vand.u32 %v236, 4294901760
    %1600 = vmatpush.msra.mxu0 %v1599
    %v1601 = vand.u32 %v235, 4294901760
    %1602 = vmatpush.msra.mxu0 %v1601
    %v1603 = vand.u32 %v1421, 4294901760
    %1604 = vmatmul.f32.gmra.mxu0 %v1603
    %v1605 = vpop.f32.mrf.mxu0
    %v1606 = vadd.f32 %v1581, %v1605
    %1607 = vdwg.mxu0
    %v1609 = vrot.slane %v1606, 6
    %v1611 = vadd.f32 %v233, %v1609
    %v1612 = vxor.u32 %v1611, 2147483648
    %v1613 = vmul.f32 %v1612, 1.442695
    %v1614 = vpow.pop %v1613
    %v1615 = vadd.f32 %v1614, 1.0
    %v1616 = vrcp.pop %v1615
    %v1617 = vmul.f32 %v1615, %v1616
    %v1618 = vsub.f32 1.0, %v1617
    %v1619 = vmul.f32 %v1616, %v1618
    %v1620 = vadd.f32 %v1616, %v1619
    %vm1621 = vweird.f32 %v1615
    %vm1622 = vweird.f32 %v1616
    %vm1623 = vmor %vm1621, %vm1622
    %v1624 = vsel %vm1623, %v1616, %v1620
    %v1625 = vand.u32 2147483647, %v1615
    %vm1626 = vcmp.eq.f32.partialorder %v1625, 8.507059e+37
    %v1627 = vand.u32 %v1615, 2147483648
    %v1628 = vor.u32 1.1754944e-38, %v1627
    %v1629 = vsel %vm1626, %v1628, %v1624
    %v1630 = vmul.f32 1.0, %v1629
    %v1631 = vtanh.pop %v1611
    %v1632 = vsel %vm245, %v1631, %v1630
    %v1634 = vrot.slane %v1411, 6
    %v1636 = vmul.f32 %v1632, %v1634
    %1638 = vrot.lane.b32.xlu0 %v1632, 64
    %v1639 = vpop.permute.xlu0 %1638
    %v1641 = vmul.f32 %v1632, %v1639
    %1643 = vrot.lane.b32.xlu0 %v1641, 32
    %v1644 = vpop.permute.xlu0 %1643
    %v1646 = vadd.f32 %v1636, %v1644
    %v1647 = vtanh.pop %v1646
    %1649 = vrot.lane.b32.xlu0 %v1647, 64
    %v1650 = vpop.permute.xlu0 %1649
    %v1652 = vmul.f32 %v1632, %v1650
    %v1654 = vrot.slane %v1652, 2
    %1655 = vrot.lane.b32.xlu0 %v1654, 32
    %v1656 = vpop.permute.xlu0 %1655
    %v1657 = vsel %vm246, %v1656, 0
    %1659 = vmatpush.msra.mxu0 0.0
    %1660 = vmatpush.msra.mxu0 0.0
    %1661 = vmatpush.msra.mxu0 0.0
    %1662 = vmatpush.msra.mxu0 0.0
    %1663 = vmatpush.msra.mxu0 0.0
    %1664 = vmatpush.msra.mxu0 0.0
    %1665 = vmatpush.msra.mxu0 0.0
    %1666 = vmatpush.msra.mxu0 0.0
    %1667 = vmatpush.msra.mxu0 0.0
    %1668 = vmatpush.msra.mxu0 0.0
    %1669 = vmatpush.msra.mxu0 0.0
    %1670 = vmatpush.msra.mxu0 0.0
    %v1671 = vand.u32 %v238, 4294901760
    %1672 = vmatpush.msra.mxu0 %v1671
    %v1673 = vand.u32 %v237, 4294901760
    %1674 = vmatpush.msra.mxu0 %v1673
    %v1675 = vand.u32 %v236, 4294901760
    %1676 = vmatpush.msra.mxu0 %v1675
    %v1677 = vand.u32 %v235, 4294901760
    %1678 = vmatpush.msra.mxu0 %v1677
    %v1679 = vand.u32 %v1657, 4294901760
    %v1680 = vsub.f32 %v1657, %v1679
    %v1681 = vand.u32 %v1680, 4294901760
    %v1682 = vsub.f32 %v1680, %v1681
    %v1683 = vand.u32 %v1682, 4294901760
    %1684 = vmatmul.f32.gmra.mxu0 %v1683
    %v1685 = vpop.f32.mrf.mxu0
    %v1686 = vadd.f32 0.0, %v1685
    %1687 = vdwg.mxu0
    %1688 = vmatpush.msra.mxu0 0.0
    %1689 = vmatpush.msra.mxu0 0.0
    %1690 = vmatpush.msra.mxu0 0.0
    %1691 = vmatpush.msra.mxu0 0.0
    %1692 = vmatpush.msra.mxu0 0.0
    %1693 = vmatpush.msra.mxu0 0.0
    %1694 = vmatpush.msra.mxu0 0.0
    %1695 = vmatpush.msra.mxu0 0.0
    %1696 = vmatpush.msra.mxu0 0.0
    %1697 = vmatpush.msra.mxu0 0.0
    %1698 = vmatpush.msra.mxu0 0.0
    %1699 = vmatpush.msra.mxu0 0.0
    %v1700 = vand.u32 %v238, 4294901760
    %v1701 = vsub.f32 %v238, %v1700
    %v1702 = vand.u32 %v1701, 4294901760
    %v1703 = vsub.f32 %v1701, %v1702
    %v1704 = vand.u32 %v1703, 4294901760
    %1705 = vmatpush.msra.mxu0 %v1704
    %v1706 = vand.u32 %v237, 4294901760
    %v1707 = vsub.f32 %v237, %v1706
    %v1708 = vand.u32 %v1707, 4294901760
    %v1709 = vsub.f32 %v1707, %v1708
    %v1710 = vand.u32 %v1709, 4294901760
    %1711 = vmatpush.msra.mxu0 %v1710
    %v1712 = vand.u32 %v236, 4294901760
    %v1713 = vsub.f32 %v236, %v1712
    %v1714 = vand.u32 %v1713, 4294901760
    %v1715 = vsub.f32 %v1713, %v1714
    %v1716 = vand.u32 %v1715, 4294901760
    %1717 = vmatpush.msra.mxu0 %v1716
    %v1718 = vand.u32 %v235, 4294901760
    %v1719 = vsub.f32 %v235, %v1718
    %v1720 = vand.u32 %v1719, 4294901760
    %v1721 = vsub.f32 %v1719, %v1720
    %v1722 = vand.u32 %v1721, 4294901760
    %1723 = vmatpush.msra.mxu0 %v1722
    %v1724 = vand.u32 %v1657, 4294901760
    %1725 = vmatmul.f32.gmra.mxu0 %v1724
    %v1726 = vpop.f32.mrf.mxu0
    %v1727 = vadd.f32 %v1686, %v1726
    %1728 = vdwg.mxu0
    %1729 = vmatpush.msra.mxu0 0.0
    %1730 = vmatpush.msra.mxu0 0.0
    %1731 = vmatpush.msra.mxu0 0.0
    %1732 = vmatpush.msra.mxu0 0.0
    %1733 = vmatpush.msra.mxu0 0.0
    %1734 = vmatpush.msra.mxu0 0.0
    %1735 = vmatpush.msra.mxu0 0.0
    %1736 = vmatpush.msra.mxu0 0.0
    %1737 = vmatpush.msra.mxu0 0.0
    %1738 = vmatpush.msra.mxu0 0.0
    %1739 = vmatpush.msra.mxu0 0.0
    %1740 = vmatpush.msra.mxu0 0.0
    %v1741 = vand.u32 %v238, 4294901760
    %v1742 = vsub.f32 %v238, %v1741
    %1743 = vmatpush.msra.mxu0 %v1742
    %v1744 = vand.u32 %v237, 4294901760
    %v1745 = vsub.f32 %v237, %v1744
    %1746 = vmatpush.msra.mxu0 %v1745
    %v1747 = vand.u32 %v236, 4294901760
    %v1748 = vsub.f32 %v236, %v1747
    %1749 = vmatpush.msra.mxu0 %v1748
    %v1750 = vand.u32 %v235, 4294901760
    %v1751 = vsub.f32 %v235, %v1750
    %1752 = vmatpush.msra.mxu0 %v1751
    %v1753 = vand.u32 %v1657, 4294901760
    %v1754 = vsub.f32 %v1657, %v1753
    %1755 = vmatmul.f32.gmra.mxu0 %v1754
    %v1756 = vpop.f32.mrf.mxu0
    %v1757 = vadd.f32 %v1727, %v1756
    %1758 = vdwg.mxu0
    %1759 = vmatpush.msra.mxu0 0.0
    %1760 = vmatpush.msra.mxu0 0.0
    %1761 = vmatpush.msra.mxu0 0.0
    %1762 = vmatpush.msra.mxu0 0.0
    %1763 = vmatpush.msra.mxu0 0.0
    %1764 = vmatpush.msra.mxu0 0.0
    %1765 = vmatpush.msra.mxu0 0.0
    %1766 = vmatpush.msra.mxu0 0.0
    %1767 = vmatpush.msra.mxu0 0.0
    %1768 = vmatpush.msra.mxu0 0.0
    %1769 = vmatpush.msra.mxu0 0.0
    %1770 = vmatpush.msra.mxu0 0.0
    %v1771 = vand.u32 %v238, 4294901760
    %1772 = vmatpush.msra.mxu0 %v1771
    %v1773 = vand.u32 %v237, 4294901760
    %1774 = vmatpush.msra.mxu0 %v1773
    %v1775 = vand.u32 %v236, 4294901760
    %1776 = vmatpush.msra.mxu0 %v1775
    %v1777 = vand.u32 %v235, 4294901760
    %1778 = vmatpush.msra.mxu0 %v1777
    %v1779 = vand.u32 %v1657, 4294901760
    %v1780 = vsub.f32 %v1657, %v1779
    %v1781 = vand.u32 %v1780, 4294901760
    %1782 = vmatmul.f32.gmra.mxu0 %v1781
    %v1783 = vpop.f32.mrf.mxu0
    %v1784 = vadd.f32 %v1757, %v1783
    %1785 = vdwg.mxu0
    %1786 = vmatpush.msra.mxu0 0.0
    %1787 = vmatpush.msra.mxu0 0.0
    %1788 = vmatpush.msra.mxu0 0.0
    %1789 = vmatpush.msra.mxu0 0.0
    %1790 = vmatpush.msra.mxu0 0.0
    %1791 = vmatpush.msra.mxu0 0.0
    %1792 = vmatpush.msra.mxu0 0.0
    %1793 = vmatpush.msra.mxu0 0.0
    %1794 = vmatpush.msra.mxu0 0.0
    %1795 = vmatpush.msra.mxu0 0.0
    %1796 = vmatpush.msra.mxu0 0.0
    %1797 = vmatpush.msra.mxu0 0.0
    %v1798 = vand.u32 %v238, 4294901760
    %v1799 = vsub.f32 %v238, %v1798
    %v1800 = vand.u32 %v1799, 4294901760
    %1801 = vmatpush.msra.mxu0 %v1800
    %v1802 = vand.u32 %v237, 4294901760
    %v1803 = vsub.f32 %v237, %v1802
    %v1804 = vand.u32 %v1803, 4294901760
    %1805 = vmatpush.msra.mxu0 %v1804
    %v1806 = vand.u32 %v236, 4294901760
    %v1807 = vsub.f32 %v236, %v1806
    %v1808 = vand.u32 %v1807, 4294901760
    %1809 = vmatpush.msra.mxu0 %v1808
    %v1810 = vand.u32 %v235, 4294901760
    %v1811 = vsub.f32 %v235, %v1810
    %v1812 = vand.u32 %v1811, 4294901760
    %1813 = vmatpush.msra.mxu0 %v1812
    %v1814 = vand.u32 %v1657, 4294901760
    %1815 = vmatmul.f32.gmra.mxu0 %v1814
    %v1816 = vpop.f32.mrf.mxu0
    %v1817 = vadd.f32 %v1784, %v1816
    %1818 = vdwg.mxu0
    %1819 = vmatpush.msra.mxu0 0.0
    %1820 = vmatpush.msra.mxu0 0.0
    %1821 = vmatpush.msra.mxu0 0.0
    %1822 = vmatpush.msra.mxu0 0.0
    %1823 = vmatpush.msra.mxu0 0.0
    %1824 = vmatpush.msra.mxu0 0.0
    %1825 = vmatpush.msra.mxu0 0.0
    %1826 = vmatpush.msra.mxu0 0.0
    %1827 = vmatpush.msra.mxu0 0.0
    %1828 = vmatpush.msra.mxu0 0.0
    %1829 = vmatpush.msra.mxu0 0.0
    %1830 = vmatpush.msra.mxu0 0.0
    %v1831 = vand.u32 %v238, 4294901760
    %1832 = vmatpush.msra.mxu0 %v1831
    %v1833 = vand.u32 %v237, 4294901760
    %1834 = vmatpush.msra.mxu0 %v1833
    %v1835 = vand.u32 %v236, 4294901760
    %1836 = vmatpush.msra.mxu0 %v1835
    %v1837 = vand.u32 %v235, 4294901760
    %1838 = vmatpush.msra.mxu0 %v1837
    %v1839 = vand.u32 %v1657, 4294901760
    %1840 = vmatmul.f32.gmra.mxu0 %v1839
    %v1841 = vpop.f32.mrf.mxu0
    %v1842 = vadd.f32 %v1817, %v1841
    %1843 = vdwg.mxu0
    %v1845 = vrot.slane %v1842, 4
    %v1847 = vadd.f32 %v233, %v1845
    %v1848 = vxor.u32 %v1847, 2147483648
    %v1849 = vmul.f32 %v1848, 1.442695
    %v1850 = vpow.pop %v1849
    %v1851 = vadd.f32 %v1850, 1.0
    %v1852 = vrcp.pop %v1851
    %v1853 = vmul.f32 %v1851, %v1852
    %v1854 = vsub.f32 1.0, %v1853
    %v1855 = vmul.f32 %v1852, %v1854
    %v1856 = vadd.f32 %v1852, %v1855
    %vm1857 = vweird.f32 %v1851
    %vm1858 = vweird.f32 %v1852
    %vm1859 = vmor %vm1857, %vm1858
    %v1860 = vsel %vm1859, %v1852, %v1856
    %v1861 = vand.u32 2147483647, %v1851
    %vm1862 = vcmp.eq.f32.partialorder %v1861, 8.507059e+37
    %v1863 = vand.u32 %v1851, 2147483648
    %v1864 = vor.u32 1.1754944e-38, %v1863
    %v1865 = vsel %vm1862, %v1864, %v1860
    %v1866 = vmul.f32 1.0, %v1865
    %v1867 = vtanh.pop %v1847
    %v1868 = vsel %vm245, %v1867, %v1866
    %v1870 = vrot.slane %v1646, 6
    %v1872 = vmul.f32 %v1868, %v1870
    %1874 = vrot.lane.b32.xlu0 %v1868, 64
    %v1875 = vpop.permute.xlu0 %1874
    %v1877 = vmul.f32 %v1868, %v1875
    %1879 = vrot.lane.b32.xlu0 %v1877, 32
    %v1880 = vpop.permute.xlu0 %1879
    %v1882 = vadd.f32 %v1872, %v1880
    %v1883 = vtanh.pop %v1882
    %1885 = vrot.lane.b32.xlu0 %v1883, 64
    %v1886 = vpop.permute.xlu0 %1885
    %v1888 = vmul.f32 %v1868, %v1886
    %v1890 = vrot.slane %v1888, 4
    %1891 = vrot.lane.b32.xlu0 %v1890, 32
    %v1892 = vpop.permute.xlu0 %1891
    %v1893 = vsel %vm246, %v1892, 0
    %1895 = vmatpush.msra.mxu0 0.0
    %1896 = vmatpush.msra.mxu0 0.0
    %1897 = vmatpush.msra.mxu0 0.0
    %1898 = vmatpush.msra.mxu0 0.0
    %1899 = vmatpush.msra.mxu0 0.0
    %1900 = vmatpush.msra.mxu0 0.0
    %1901 = vmatpush.msra.mxu0 0.0
    %1902 = vmatpush.msra.mxu0 0.0
    %1903 = vmatpush.msra.mxu0 0.0
    %1904 = vmatpush.msra.mxu0 0.0
    %1905 = vmatpush.msra.mxu0 0.0
    %1906 = vmatpush.msra.mxu0 0.0
    %v1907 = vand.u32 %v238, 4294901760
    %1908 = vmatpush.msra.mxu0 %v1907
    %v1909 = vand.u32 %v237, 4294901760
    %1910 = vmatpush.msra.mxu0 %v1909
    %v1911 = vand.u32 %v236, 4294901760
    %1912 = vmatpush.msra.mxu0 %v1911
    %v1913 = vand.u32 %v235, 4294901760
    %1914 = vmatpush.msra.mxu0 %v1913
    %v1915 = vand.u32 %v1893, 4294901760
    %v1916 = vsub.f32 %v1893, %v1915
    %v1917 = vand.u32 %v1916, 4294901760
    %v1918 = vsub.f32 %v1916, %v1917
    %v1919 = vand.u32 %v1918, 4294901760
    %1920 = vmatmul.f32.gmra.mxu0 %v1919
    %v1921 = vpop.f32.mrf.mxu0
    %v1922 = vadd.f32 0.0, %v1921
    %1923 = vdwg.mxu0
    %1924 = vmatpush.msra.mxu0 0.0
    %1925 = vmatpush.msra.mxu0 0.0
    %1926 = vmatpush.msra.mxu0 0.0
    %1927 = vmatpush.msra.mxu0 0.0
    %1928 = vmatpush.msra.mxu0 0.0
    %1929 = vmatpush.msra.mxu0 0.0
    %1930 = vmatpush.msra.mxu0 0.0
    %1931 = vmatpush.msra.mxu0 0.0
    %1932 = vmatpush.msra.mxu0 0.0
    %1933 = vmatpush.msra.mxu0 0.0
    %1934 = vmatpush.msra.mxu0 0.0
    %1935 = vmatpush.msra.mxu0 0.0
    %v1936 = vand.u32 %v238, 4294901760
    %v1937 = vsub.f32 %v238, %v1936
    %v1938 = vand.u32 %v1937, 4294901760
    %v1939 = vsub.f32 %v1937, %v1938
    %v1940 = vand.u32 %v1939, 4294901760
    %1941 = vmatpush.msra.mxu0 %v1940
    %v1942 = vand.u32 %v237, 4294901760
    %v1943 = vsub.f32 %v237, %v1942
    %v1944 = vand.u32 %v1943, 4294901760
    %v1945 = vsub.f32 %v1943, %v1944
    %v1946 = vand.u32 %v1945, 4294901760
    %1947 = vmatpush.msra.mxu0 %v1946
    %v1948 = vand.u32 %v236, 4294901760
    %v1949 = vsub.f32 %v236, %v1948
    %v1950 = vand.u32 %v1949, 4294901760
    %v1951 = vsub.f32 %v1949, %v1950
    %v1952 = vand.u32 %v1951, 4294901760
    %1953 = vmatpush.msra.mxu0 %v1952
    %v1954 = vand.u32 %v235, 4294901760
    %v1955 = vsub.f32 %v235, %v1954
    %v1956 = vand.u32 %v1955, 4294901760
    %v1957 = vsub.f32 %v1955, %v1956
    %v1958 = vand.u32 %v1957, 4294901760
    %1959 = vmatpush.msra.mxu0 %v1958
    %v1960 = vand.u32 %v1893, 4294901760
    %1961 = vmatmul.f32.gmra.mxu0 %v1960
    %v1962 = vpop.f32.mrf.mxu0
    %v1963 = vadd.f32 %v1922, %v1962
    %1964 = vdwg.mxu0
    %1965 = vmatpush.msra.mxu0 0.0
    %1966 = vmatpush.msra.mxu0 0.0
    %1967 = vmatpush.msra.mxu0 0.0
    %1968 = vmatpush.msra.mxu0 0.0
    %1969 = vmatpush.msra.mxu0 0.0
    %1970 = vmatpush.msra.mxu0 0.0
    %1971 = vmatpush.msra.mxu0 0.0
    %1972 = vmatpush.msra.mxu0 0.0
    %1973 = vmatpush.msra.mxu0 0.0
    %1974 = vmatpush.msra.mxu0 0.0
    %1975 = vmatpush.msra.mxu0 0.0
    %1976 = vmatpush.msra.mxu0 0.0
    %v1977 = vand.u32 %v238, 4294901760
    %v1978 = vsub.f32 %v238, %v1977
    %1979 = vmatpush.msra.mxu0 %v1978
    %v1980 = vand.u32 %v237, 4294901760
    %v1981 = vsub.f32 %v237, %v1980
    %1982 = vmatpush.msra.mxu0 %v1981
    %v1983 = vand.u32 %v236, 4294901760
    %v1984 = vsub.f32 %v236, %v1983
    %1985 = vmatpush.msra.mxu0 %v1984
    %v1986 = vand.u32 %v235, 4294901760
    %v1987 = vsub.f32 %v235, %v1986
    %1988 = vmatpush.msra.mxu0 %v1987
    %v1989 = vand.u32 %v1893, 4294901760
    %v1990 = vsub.f32 %v1893, %v1989
    %1991 = vmatmul.f32.gmra.mxu0 %v1990
    %v1992 = vpop.f32.mrf.mxu0
    %v1993 = vadd.f32 %v1963, %v1992
    %1994 = vdwg.mxu0
    %1995 = vmatpush.msra.mxu0 0.0
    %1996 = vmatpush.msra.mxu0 0.0
    %1997 = vmatpush.msra.mxu0 0.0
    %1998 = vmatpush.msra.mxu0 0.0
    %1999 = vmatpush.msra.mxu0 0.0
    %2000 = vmatpush.msra.mxu0 0.0
    %2001 = vmatpush.msra.mxu0 0.0
    %2002 = vmatpush.msra.mxu0 0.0
    %2003 = vmatpush.msra.mxu0 0.0
    %2004 = vmatpush.msra.mxu0 0.0
    %2005 = vmatpush.msra.mxu0 0.0
    %2006 = vmatpush.msra.mxu0 0.0
    %v2007 = vand.u32 %v238, 4294901760
    %2008 = vmatpush.msra.mxu0 %v2007
    %v2009 = vand.u32 %v237, 4294901760
    %2010 = vmatpush.msra.mxu0 %v2009
    %v2011 = vand.u32 %v236, 4294901760
    %2012 = vmatpush.msra.mxu0 %v2011
    %v2013 = vand.u32 %v235, 4294901760
    %2014 = vmatpush.msra.mxu0 %v2013
    %v2015 = vand.u32 %v1893, 4294901760
    %v2016 = vsub.f32 %v1893, %v2015
    %v2017 = vand.u32 %v2016, 4294901760
    %2018 = vmatmul.f32.gmra.mxu0 %v2017
    %v2019 = vpop.f32.mrf.mxu0
    %v2020 = vadd.f32 %v1993, %v2019
    %2021 = vdwg.mxu0
    %2022 = vmatpush.msra.mxu0 0.0
    %2023 = vmatpush.msra.mxu0 0.0
    %2024 = vmatpush.msra.mxu0 0.0
    %2025 = vmatpush.msra.mxu0 0.0
    %2026 = vmatpush.msra.mxu0 0.0
    %2027 = vmatpush.msra.mxu0 0.0
    %2028 = vmatpush.msra.mxu0 0.0
    %2029 = vmatpush.msra.mxu0 0.0
    %2030 = vmatpush.msra.mxu0 0.0
    %2031 = vmatpush.msra.mxu0 0.0
    %2032 = vmatpush.msra.mxu0 0.0
    %2033 = vmatpush.msra.mxu0 0.0
    %v2034 = vand.u32 %v238, 4294901760
    %v2035 = vsub.f32 %v238, %v2034
    %v2036 = vand.u32 %v2035, 4294901760
    %2037 = vmatpush.msra.mxu0 %v2036
    %v2038 = vand.u32 %v237, 4294901760
    %v2039 = vsub.f32 %v237, %v2038
    %v2040 = vand.u32 %v2039, 4294901760
    %2041 = vmatpush.msra.mxu0 %v2040
    %v2042 = vand.u32 %v236, 4294901760
    %v2043 = vsub.f32 %v236, %v2042
    %v2044 = vand.u32 %v2043, 4294901760
    %2045 = vmatpush.msra.mxu0 %v2044
    %v2046 = vand.u32 %v235, 4294901760
    %v2047 = vsub.f32 %v235, %v2046
    %v2048 = vand.u32 %v2047, 4294901760
    %2049 = vmatpush.msra.mxu0 %v2048
    %v2050 = vand.u32 %v1893, 4294901760
    %2051 = vmatmul.f32.gmra.mxu0 %v2050
    %v2052 = vpop.f32.mrf.mxu0
    %v2053 = vadd.f32 %v2020, %v2052
    %2054 = vdwg.mxu0
    %2055 = vmatpush.msra.mxu0 0.0
    %2056 = vmatpush.msra.mxu0 0.0
    %2057 = vmatpush.msra.mxu0 0.0
    %2058 = vmatpush.msra.mxu0 0.0
    %2059 = vmatpush.msra.mxu0 0.0
    %2060 = vmatpush.msra.mxu0 0.0
    %2061 = vmatpush.msra.mxu0 0.0
    %2062 = vmatpush.msra.mxu0 0.0
    %2063 = vmatpush.msra.mxu0 0.0
    %2064 = vmatpush.msra.mxu0 0.0
    %2065 = vmatpush.msra.mxu0 0.0
    %2066 = vmatpush.msra.mxu0 0.0
    %v2067 = vand.u32 %v238, 4294901760
    %2068 = vmatpush.msra.mxu0 %v2067
    %v2069 = vand.u32 %v237, 4294901760
    %2070 = vmatpush.msra.mxu0 %v2069
    %v2071 = vand.u32 %v236, 4294901760
    %2072 = vmatpush.msra.mxu0 %v2071
    %v2073 = vand.u32 %v235, 4294901760
    %2074 = vmatpush.msra.mxu0 %v2073
    %v2075 = vand.u32 %v1893, 4294901760
    %2076 = vmatmul.f32.gmra.mxu0 %v2075
    %v2077 = vpop.f32.mrf.mxu0
    %v2078 = vadd.f32 %v2053, %v2077
    %2079 = vdwg.mxu0
    %v2081 = vrot.slane %v2078, 2
    %v2083 = vadd.f32 %v233, %v2081
    %v2084 = vxor.u32 %v2083, 2147483648
    %v2085 = vmul.f32 %v2084, 1.442695
    %v2086 = vpow.pop %v2085
    %v2087 = vadd.f32 %v2086, 1.0
    %v2088 = vrcp.pop %v2087
    %v2089 = vmul.f32 %v2087, %v2088
    %v2090 = vsub.f32 1.0, %v2089
    %v2091 = vmul.f32 %v2088, %v2090
    %v2092 = vadd.f32 %v2088, %v2091
    %vm2093 = vweird.f32 %v2087
    %vm2094 = vweird.f32 %v2088
    %vm2095 = vmor %vm2093, %vm2094
    %v2096 = vsel %vm2095, %v2088, %v2092
    %v2097 = vand.u32 2147483647, %v2087
    %vm2098 = vcmp.eq.f32.partialorder %v2097, 8.507059e+37
    %v2099 = vand.u32 %v2087, 2147483648
    %v2100 = vor.u32 1.1754944e-38, %v2099
    %v2101 = vsel %vm2098, %v2100, %v2096
    %v2102 = vmul.f32 1.0, %v2101
    %v2103 = vtanh.pop %v2083
    %v2104 = vsel %vm245, %v2103, %v2102
    %v2106 = vrot.slane %v1882, 6
    %v2108 = vmul.f32 %v2104, %v2106
    %2110 = vrot.lane.b32.xlu0 %v2104, 64
    %v2111 = vpop.permute.xlu0 %2110
    %v2113 = vmul.f32 %v2104, %v2111
    %2115 = vrot.lane.b32.xlu0 %v2113, 32
    %v2116 = vpop.permute.xlu0 %2115
    %v2118 = vadd.f32 %v2108, %v2116
    %v2119 = vtanh.pop %v2118
    %2121 = vrot.lane.b32.xlu0 %v2119, 64
    %v2122 = vpop.permute.xlu0 %2121
    %v2124 = vmul.f32 %v2104, %v2122
    %v2125 = vld [vmem:[%s6] sm:$0xff]
    %v2126 = vld [vmem:[%s6 + $0x8] sm:$0xff]
    %v2127 = vld [vmem:[%s6 + $0x10] sm:$0xff]
    %v2128 = vld [vmem:[%s6 + $0x18] sm:$0xff]
    %v2129 = vld [vmem:[%s7] sm:$0x1]
    %v2131 = vperm.slane %v2129, 0
    %v2134 = vrot.slane %v2124, 6
    %2135 = vrot.lane.b32.xlu0 %v2134, 32
    %v2136 = vpop.permute.xlu0 %2135
    %v2137 = vsel %vm246, %v2136, 0
    %2139 = vmatpush.msra.mxu0 0.0
    %2140 = vmatpush.msra.mxu0 0.0
    %2141 = vmatpush.msra.mxu0 0.0
    %2142 = vmatpush.msra.mxu0 0.0
    %2143 = vmatpush.msra.mxu0 0.0
    %2144 = vmatpush.msra.mxu0 0.0
    %2145 = vmatpush.msra.mxu0 0.0
    %2146 = vmatpush.msra.mxu0 0.0
    %2147 = vmatpush.msra.mxu0 0.0
    %2148 = vmatpush.msra.mxu0 0.0
    %2149 = vmatpush.msra.mxu0 0.0
    %2150 = vmatpush.msra.mxu0 0.0
    %v2151 = vand.u32 %v2128, 4294901760
    %2152 = vmatpush.msra.mxu0 %v2151
    %v2153 = vand.u32 %v2127, 4294901760
    %2154 = vmatpush.msra.mxu0 %v2153
    %v2155 = vand.u32 %v2126, 4294901760
    %2156 = vmatpush.msra.mxu0 %v2155
    %v2157 = vand.u32 %v2125, 4294901760
    %2158 = vmatpush.msra.mxu0 %v2157
    %v2159 = vand.u32 %v2137, 4294901760
    %v2160 = vsub.f32 %v2137, %v2159
    %v2161 = vand.u32 %v2160, 4294901760
    %v2162 = vsub.f32 %v2160, %v2161
    %v2163 = vand.u32 %v2162, 4294901760
    %2164 = vmatmul.f32.gmra.mxu0 %v2163
    %v2165 = vpop.f32.mrf.mxu0
    %v2166 = vadd.f32 %v2131, %v2165
    %2167 = vdwg.mxu0
    %2168 = vmatpush.msra.mxu0 0.0
    %2169 = vmatpush.msra.mxu0 0.0
    %2170 = vmatpush.msra.mxu0 0.0
    %2171 = vmatpush.msra.mxu0 0.0
    %2172 = vmatpush.msra.mxu0 0.0
    %2173 = vmatpush.msra.mxu0 0.0
    %2174 = vmatpush.msra.mxu0 0.0
    %2175 = vmatpush.msra.mxu0 0.0
    %2176 = vmatpush.msra.mxu0 0.0
    %2177 = vmatpush.msra.mxu0 0.0
    %2178 = vmatpush.msra.mxu0 0.0
    %2179 = vmatpush.msra.mxu0 0.0
    %v2180 = vand.u32 %v2128, 4294901760
    %v2181 = vsub.f32 %v2128, %v2180
    %v2182 = vand.u32 %v2181, 4294901760
    %v2183 = vsub.f32 %v2181, %v2182
    %v2184 = vand.u32 %v2183, 4294901760
    %2185 = vmatpush.msra.mxu0 %v2184
    %v2186 = vand.u32 %v2127, 4294901760
    %v2187 = vsub.f32 %v2127, %v2186
    %v2188 = vand.u32 %v2187, 4294901760
    %v2189 = vsub.f32 %v2187, %v2188
    %v2190 = vand.u32 %v2189, 4294901760
    %2191 = vmatpush.msra.mxu0 %v2190
    %v2192 = vand.u32 %v2126, 4294901760
    %v2193 = vsub.f32 %v2126, %v2192
    %v2194 = vand.u32 %v2193, 4294901760
    %v2195 = vsub.f32 %v2193, %v2194
    %v2196 = vand.u32 %v2195, 4294901760
    %2197 = vmatpush.msra.mxu0 %v2196
    %v2198 = vand.u32 %v2125, 4294901760
    %v2199 = vsub.f32 %v2125, %v2198
    %v2200 = vand.u32 %v2199, 4294901760
    %v2201 = vsub.f32 %v2199, %v2200
    %v2202 = vand.u32 %v2201, 4294901760
    %2203 = vmatpush.msra.mxu0 %v2202
    %v2204 = vand.u32 %v2137, 4294901760
    %2205 = vmatmul.f32.gmra.mxu0 %v2204
    %v2206 = vpop.f32.mrf.mxu0
    %v2207 = vadd.f32 %v2166, %v2206
    %2208 = vdwg.mxu0
    %2209 = vmatpush.msra.mxu0 0.0
    %2210 = vmatpush.msra.mxu0 0.0
    %2211 = vmatpush.msra.mxu0 0.0
    %2212 = vmatpush.msra.mxu0 0.0
    %2213 = vmatpush.msra.mxu0 0.0
    %2214 = vmatpush.msra.mxu0 0.0
    %2215 = vmatpush.msra.mxu0 0.0
    %2216 = vmatpush.msra.mxu0 0.0
    %2217 = vmatpush.msra.mxu0 0.0
    %2218 = vmatpush.msra.mxu0 0.0
    %2219 = vmatpush.msra.mxu0 0.0
    %2220 = vmatpush.msra.mxu0 0.0
    %v2221 = vand.u32 %v2128, 4294901760
    %v2222 = vsub.f32 %v2128, %v2221
    %2223 = vmatpush.msra.mxu0 %v2222
    %v2224 = vand.u32 %v2127, 4294901760
    %v2225 = vsub.f32 %v2127, %v2224
    %2226 = vmatpush.msra.mxu0 %v2225
    %v2227 = vand.u32 %v2126, 4294901760
    %v2228 = vsub.f32 %v2126, %v2227
    %2229 = vmatpush.msra.mxu0 %v2228
    %v2230 = vand.u32 %v2125, 4294901760
    %v2231 = vsub.f32 %v2125, %v2230
    %2232 = vmatpush.msra.mxu0 %v2231
    %v2233 = vand.u32 %v2137, 4294901760
    %v2234 = vsub.f32 %v2137, %v2233
    %2235 = vmatmul.f32.gmra.mxu0 %v2234
    %v2236 = vpop.f32.mrf.mxu0
    %v2237 = vadd.f32 %v2207, %v2236
    %2238 = vdwg.mxu0
    %2239 = vmatpush.msra.mxu0 0.0
    %2240 = vmatpush.msra.mxu0 0.0
    %2241 = vmatpush.msra.mxu0 0.0
    %2242 = vmatpush.msra.mxu0 0.0
    %2243 = vmatpush.msra.mxu0 0.0
    %2244 = vmatpush.msra.mxu0 0.0
    %2245 = vmatpush.msra.mxu0 0.0
    %2246 = vmatpush.msra.mxu0 0.0
    %2247 = vmatpush.msra.mxu0 0.0
    %2248 = vmatpush.msra.mxu0 0.0
    %2249 = vmatpush.msra.mxu0 0.0
    %2250 = vmatpush.msra.mxu0 0.0
    %v2251 = vand.u32 %v2128, 4294901760
    %2252 = vmatpush.msra.mxu0 %v2251
    %v2253 = vand.u32 %v2127, 4294901760
    %2254 = vmatpush.msra.mxu0 %v2253
    %v2255 = vand.u32 %v2126, 4294901760
    %2256 = vmatpush.msra.mxu0 %v2255
    %v2257 = vand.u32 %v2125, 4294901760
    %2258 = vmatpush.msra.mxu0 %v2257
    %v2259 = vand.u32 %v2137, 4294901760
    %v2260 = vsub.f32 %v2137, %v2259
    %v2261 = vand.u32 %v2260, 4294901760
    %2262 = vmatmul.f32.gmra.mxu0 %v2261
    %v2263 = vpop.f32.mrf.mxu0
    %v2264 = vadd.f32 %v2237, %v2263
    %2265 = vdwg.mxu0
    %2266 = vmatpush.msra.mxu0 0.0
    %2267 = vmatpush.msra.mxu0 0.0
    %2268 = vmatpush.msra.mxu0 0.0
    %2269 = vmatpush.msra.mxu0 0.0
    %2270 = vmatpush.msra.mxu0 0.0
    %2271 = vmatpush.msra.mxu0 0.0
    %2272 = vmatpush.msra.mxu0 0.0
    %2273 = vmatpush.msra.mxu0 0.0
    %2274 = vmatpush.msra.mxu0 0.0
    %2275 = vmatpush.msra.mxu0 0.0
    %2276 = vmatpush.msra.mxu0 0.0
    %2277 = vmatpush.msra.mxu0 0.0
    %v2278 = vand.u32 %v2128, 4294901760
    %v2279 = vsub.f32 %v2128, %v2278
    %v2280 = vand.u32 %v2279, 4294901760
    %2281 = vmatpush.msra.mxu0 %v2280
    %v2282 = vand.u32 %v2127, 4294901760
    %v2283 = vsub.f32 %v2127, %v2282
    %v2284 = vand.u32 %v2283, 4294901760
    %2285 = vmatpush.msra.mxu0 %v2284
    %v2286 = vand.u32 %v2126, 4294901760
    %v2287 = vsub.f32 %v2126, %v2286
    %v2288 = vand.u32 %v2287, 4294901760
    %2289 = vmatpush.msra.mxu0 %v2288
    %v2290 = vand.u32 %v2125, 4294901760
    %v2291 = vsub.f32 %v2125, %v2290
    %v2292 = vand.u32 %v2291, 4294901760
    %2293 = vmatpush.msra.mxu0 %v2292
    %v2294 = vand.u32 %v2137, 4294901760
    %2295 = vmatmul.f32.gmra.mxu0 %v2294
    %v2296 = vpop.f32.mrf.mxu0
    %v2297 = vadd.f32 %v2264, %v2296
    %2298 = vdwg.mxu0
    %2299 = vmatpush.msra.mxu0 0.0
    %2300 = vmatpush.msra.mxu0 0.0
    %2301 = vmatpush.msra.mxu0 0.0
    %2302 = vmatpush.msra.mxu0 0.0
    %2303 = vmatpush.msra.mxu0 0.0
    %2304 = vmatpush.msra.mxu0 0.0
    %2305 = vmatpush.msra.mxu0 0.0
    %2306 = vmatpush.msra.mxu0 0.0
    %2307 = vmatpush.msra.mxu0 0.0
    %2308 = vmatpush.msra.mxu0 0.0
    %2309 = vmatpush.msra.mxu0 0.0
    %2310 = vmatpush.msra.mxu0 0.0
    %v2311 = vand.u32 %v2128, 4294901760
    %2312 = vmatpush.msra.mxu0 %v2311
    %v2313 = vand.u32 %v2127, 4294901760
    %2314 = vmatpush.msra.mxu0 %v2313
    %v2315 = vand.u32 %v2126, 4294901760
    %2316 = vmatpush.msra.mxu0 %v2315
    %v2317 = vand.u32 %v2125, 4294901760
    %2318 = vmatpush.msra.mxu0 %v2317
    %v2319 = vand.u32 %v2137, 4294901760
    %2320 = vmatmul.f32.gmra.mxu0 %v2319
    %v2321 = vpop.f32.mrf.mxu0
    %v2322 = vadd.f32 %v2297, %v2321
    %2323 = vdwg.mxu0
    %vm2324 = vcmask 58368
    %2325 = vst.msk [vmem:[#allocation2] sm:$0x3] %vm2324, %v2322
    // Predicated region
    $region34: #{simple_lstm_forward.1} parent=1 // pred_check
      _
    $region35: #{simple_lstm_forward.1} parent=1 // pred_check_branch
      %2327 = sbr.rel (0) target = $region37
    $region36: #{simple_lstm_forward.1} parent=1 // pred_region
      %2329 = vsyncadd [#allocation3], 0
      %s2331 = sshll.u32 [#allocation2], 4
      %s2332 = int_to_ptr.vmem [resolvable:$true] %s2331
      %s2333 = sshll.u32 %s8, 4
      %s2334 = int_to_ptr.hbm [resolvable:$true] %s2333
      %2336 = dma.vmem_to_hbm [thread:$0]  %s2332, 32, %s2334, [#allocation3]
    $region37: #{simple_lstm_forward.1} parent=1 // pred_fallthru
      _
    // Predicated region
    $region38: #{simple_lstm_forward.1} parent=1 // pred_check
      _
    $region39: #{simple_lstm_forward.1} parent=1 // pred_check_branch
      %2338 = sbr.rel (0) target = $region41
    $region40: #{simple_lstm_forward.1} parent=1 // pred_region
      %2340 = dma.done [#allocation3], 32
    $region41: #{simple_lstm_forward.1} parent=1 // pred_fallthru
      _
    %2341 = vsyncpa [#allocation3], 1

</llo_original>
